<compile_context>
chip_gen: v7x
topology: tpu7x:2x2x1
jax: 0.10.0
libtpu: 0.0.40
codegen_flags: <defaults>
</compile_context>

<pallas_src>
import functools
import math

import jax
import jax.numpy as jnp
import numpy as np
from jax import lax
from jax.experimental import pallas as pl
from jax.experimental.pallas import tpu as pltpu


def _round_up(x, m):
    return (x + m - 1) // m * m


# ------------------------------ Pallas kernel ------------------------------ #
def _conv_relu_kernel(x_ref, w_ref, b_ref, o_ref, *, kh_taps, h_out, w_out,
                      w_out_pad, row_chunk):
    """One batch element: conv (tap matmuls over packed patches) + bias + ReLU.

    x_ref: (1, h_out + kh_taps - 1, W_OUT_PAD, KC_P)  bf16  lanes = (kw[,kh], cin)
    w_ref: (kh_taps, KC_P, COUT_P)                    bf16  resident across grid
    b_ref: (1, COUT_P)                                f32   resident across grid
    o_ref: (1, h_out, W_OUT_PAD, COUT_P)              bf16
    """
    kc_p = x_ref.shape[-1]
    cout_p = o_ref.shape[-1]
    bias = b_ref[...]                                            # (1, COUT_P) f32

    # Zero the alignment-padded output-width columns so the padded NHWC layout
    # is safe to persist between layers (ReLU(bias) garbage would live there).
    wmask = (lax.broadcasted_iota(jnp.int32, (1, 1, w_out_pad, 1), 2)
             < w_out).astype(jnp.float32)

    # Chunk M (output rows) so the live f32 accumulator stays <= ~16 vregs,
    # taps innermost so the dots accumulate back-to-back.
    for r0 in range(0, h_out, row_chunk):
        rows = min(row_chunk, h_out - r0)
        mt = rows * w_out_pad
        acc = jnp.zeros((mt, cout_p), jnp.float32)
        for t in range(kh_taps):
            # Leading-dim (H) slice + reshape: contiguous, no strided VMEM copy;
            # already bf16 (cast once at pack time).
            lhs = x_ref[:, r0 + t:r0 + t + rows, :, :].reshape(mt, kc_p)
            acc = acc + jnp.dot(lhs, w_ref[t],
                                preferred_element_type=jnp.float32)
        y = jnp.maximum(acc + bias, 0.0)                         # f32 epilogue
        y = y.reshape(1, rows, w_out_pad, cout_p) * wmask
        o_ref[:, r0:r0 + rows, :, :] = y.astype(o_ref.dtype)


# --------------------------- patch packing (XLA) --------------------------- #
def _pack_patches(a, *, k, stride, padding, fold_kh, kc_p):
    """NHWC activations (real channels) -> lane-packed conv patches, bf16.

    fold_kh=False (stride must be 1): lanes = (kw, cin); kernel loops K kh-taps.
    fold_kh=True : full im2col, lanes = (kh, kw, cin); one matmul per M-tile and
    the conv stride is applied here (only strided output positions computed).
    """
    B, H, W, C = a.shape
    ap = jnp.pad(a, ((0, 0), (padding, padding), (padding, padding), (0, 0)))
    hp, wp = H + 2 * padding, W + 2 * padding
    h_out = (hp - k) // stride + 1
    w_out = (wp - k) // stride + 1
    w_out_pad = _round_up(w_out, 8)                 # sublane-aligned output width

    if fold_kh:
        parts = [ap[:, kh:kh + (h_out - 1) * stride + 1:stride,
                       kw:kw + (w_out - 1) * stride + 1:stride, :]
                 for kh in range(k) for kw in range(k)]
        x = jnp.concatenate(parts, axis=-1)         # (B, h_out, w_out, K*K*C)
        kh_taps = 1
    else:
        assert stride == 1
        parts = [ap[:, :, kw:kw + w_out, :] for kw in range(k)]
        x = jnp.concatenate(parts, axis=-1)         # (B, hp, w_out, K*C)
        kh_taps = k

    x = jnp.pad(x, ((0, 0), (0, 0), (0, w_out_pad - w_out),
                    (0, kc_p - x.shape[-1])))
    return x.astype(jnp.bfloat16), h_out, w_out, w_out_pad, kh_taps


# ------------------------------ layer wrapper ------------------------------ #
def _conv_relu_layer(a, w_packed, b_pad, cfg):
    """a: (B, H, W, c_in) -> (B, h_out, w_out_pad, COUT_P) bf16 (padded layout)."""
    k, stride, padding = cfg["k"], cfg["stride"], cfg["padding"]
    kc_p, cout_p = cfg["kc_p"], cfg["cout_p"]

    x, h_out, w_out, w_out_pad, kh_taps = _pack_patches(
        a, k=k, stride=stride, padding=padding, fold_kh=cfg["fold_kh"], kc_p=kc_p)
    B = x.shape[0]
    h_rows = x.shape[1]
    assert h_rows == h_out + kh_taps - 1
    assert w_packed.shape == (kh_taps, kc_p, cout_p)

    row_chunk = max(1, 128 // w_out_pad)            # ~128 M-rows per acc chunk

    # Honest advisory cost: real MACs (unpadded) and actual DMA bytes.
    flops = 2 * B * h_out * w_out * (k * k * cfg["c_in"]) * cfg["c_out"]
    bytes_accessed = (x.size * 2 + w_packed.size * 2 + b_pad.size * 4
                      + B * h_out * w_out_pad * cout_p * 2)

    # VMEM budget derived from the actual blocks (double-buffered activations),
    # not a hard-coded per-generation constant.
    bytes_x_blk = h_rows * w_out_pad * kc_p * 2
    bytes_o_blk = h_out * w_out_pad * cout_p * 2
    bytes_wb = w_packed.size * 2 + b_pad.size * 4
    vmem_limit = int(max(8 << 20,
                         min(60 << 20,
                             4 * (bytes_x_blk + bytes_o_blk)
                             + 2 * bytes_wb + (4 << 20))))

    kernel = functools.partial(
        _conv_relu_kernel, kh_taps=kh_taps, h_out=h_out, w_out=w_out,
        w_out_pad=w_out_pad, row_chunk=row_chunk)

    y = pl.pallas_call(
        kernel,
        out_shape=jax.ShapeDtypeStruct((B, h_out, w_out_pad, cout_p),
                                       jnp.bfloat16),
        grid=(B,),
        in_specs=[
            pl.BlockSpec((1, h_rows, w_out_pad, kc_p),
                         lambda n: (n, 0, 0, 0),
                         memory_space=pltpu.MemorySpace.VMEM),
            pl.BlockSpec((kh_taps, kc_p, cout_p),
                         lambda n: (0, 0, 0),            # weights resident
                         memory_space=pltpu.MemorySpace.VMEM),
            pl.BlockSpec((1, cout_p),
                         lambda n: (0, 0),               # bias resident
                         memory_space=pltpu.MemorySpace.VMEM),
        ],
        out_specs=pl.BlockSpec((1, h_out, w_out_pad, cout_p),
                               lambda n: (n, 0, 0, 0),
                               memory_space=pltpu.MemorySpace.VMEM),
        compiler_params=pltpu.CompilerParams(
            dimension_semantics=("parallel",),   # B=2 feeds both TCs on v7x
            vmem_limit_bytes=vmem_limit),
        cost_estimate=pl.CostEstimate(
            flops=int(flops), transcendentals=0,
            bytes_accessed=int(bytes_accessed)),
    )(x, w_packed, b_pad)
    return y, h_out, w_out


# ------------------------------ model forward ------------------------------ #
def conv2d_model_forward(x_nchw, params, config):
    """Conv2dModel.forward: [B, C, H, W] -> conv-stack output [B, C_L, H', W']."""
    a = jnp.transpose(x_nchw, (0, 2, 3, 1))             # NHWC, real channels
    for (w_packed, b_pad), cfg in zip(params, config["layers"]):
        y, h_out, w_out = _conv_relu_layer(a, w_packed, b_pad, cfg)
        # Drop alignment padding; this slice fuses into the next layer's
        # patch-pack copy (one wrapper pass per layer, bf16 throughout).
        a = y[:, :, :w_out, :cfg["c_out"]]
        # TODO(synk): nn.Dropout is training-only (dropout=0 in this config).
        mp = cfg["maxp_stride"]
        if mp > 1:
            # TODO(synk): MaxPool2d path is plain jnp (unused: use_maxpool=False).
            B_, Ho, Wo, C_ = a.shape
            a = a[:, :Ho - Ho % mp, :Wo - Wo % mp, :]
            a = a.reshape(B_, Ho // mp, mp, Wo // mp, mp, C_).max(axis=(2, 4))
    return jnp.transpose(a, (0, 3, 1, 2)).astype(jnp.float32)   # back to NCHW


# ------------------------------ param builder ------------------------------ #
def init_conv2d_model_params(key, in_channels, channels, kernel_sizes, strides,
                             paddings=None, use_maxpool=False):
    if paddings is None:
        paddings = [0] * len(channels)
    assert len(channels) == len(kernel_sizes) == len(strides) == len(paddings)
    in_chs = [in_channels] + list(channels[:-1])
    ones = [1] * len(strides)
    if use_maxpool:
        maxp_strides, conv_strides = list(strides), ones
    else:
        maxp_strides, conv_strides = ones, list(strides)

    params, layer_cfgs, ref_weights = [], [], []
    for ic, oc, k, s, p, mp in zip(in_chs, channels, kernel_sizes, conv_strides,
                                   paddings, maxp_strides):
        key, kw_key, kb_key = jax.random.split(key, 3)
        fan_in = ic * k * k
        bound = 1.0 / math.sqrt(fan_in)    # torch.nn.Conv2d default init scale
        w = jax.random.uniform(kw_key, (oc, ic, k, k), jnp.float32, -bound, bound)
        b = jax.random.uniform(kb_key, (oc,), jnp.float32, -bound, bound)
        ref_weights.append((w, b))

        # Pack K*K taps into the MXU contraction dim.  Full im2col (fold kh+kw)
        # when it shrinks the 128-padded contraction (small c_in) or when the
        # conv is strided; otherwise fold kw only -> (K, K*c_in, c_out) taps.
        fold_kh = (s > 1) or (_round_up(k * k * ic, 128)
                              < k * _round_up(k * ic, 128))
        kh_taps = 1 if fold_kh else k
        kc = k * k * ic if fold_kh else k * ic
        kc_p = _round_up(kc, 128)
        cout_p = _round_up(oc, 128)

        wt = jnp.transpose(w, (2, 3, 1, 0)).reshape(kh_taps, kc, oc)  # (kh,(kw,ci),o)
        wt = jnp.pad(wt, ((0, 0), (0, kc_p - kc), (0, cout_p - oc)))
        wt = wt.astype(jnp.bfloat16)
        b_pad = jnp.pad(b, (0, cout_p - oc)).reshape(1, cout_p).astype(jnp.float32)

        params.append((wt, b_pad))
        layer_cfgs.append(dict(k=k, stride=s, padding=p, c_in=ic, c_out=oc,
                               fold_kh=fold_kh, kc_p=kc_p, cout_p=cout_p,
                               maxp_stride=mp))

    config = dict(layers=layer_cfgs)
    return params, ref_weights, config


# ----------------------------------- main ----------------------------------- #
if __name__ == "__main__":
    batch, in_channels, H, W = 2, 4, 16, 16
    channels = [32, 32]
    kernel_sizes = [3, 3]
    strides = [1, 1]
    paddings = [0, 0]
    use_maxpool = False

    key = jax.random.PRNGKey(0)
    key, kx = jax.random.split(key)
    x = jax.random.normal(kx, (batch, in_channels, H, W), jnp.float32)

    params, ref_weights, config = init_conv2d_model_params(
        key, in_channels, channels, kernel_sizes, strides, paddings, use_maxpool)

    fwd = jax.jit(functools.partial(conv2d_model_forward,
                                    params=params, config=config))
    y = fwd(x)
    jax.block_until_ready(y)

    # Reference: plain XLA conv with the SAME bf16 rounding of weights and of
    # the inter-layer activations that the kernel pipeline applies.
    def reference_forward(x_nchw):
        a = x_nchw.astype(jnp.float32)
        for (w, b), cfg in zip(ref_weights, config["layers"]):
            s, p, mp = cfg["stride"], cfg["padding"], cfg["maxp_stride"]
            a_b = a.astype(jnp.bfloat16).astype(jnp.float32)
            w_b = w.astype(jnp.bfloat16).astype(jnp.float32)
            a = lax.conv_general_dilated(
                a_b, w_b, window_strides=(s, s), padding=[(p, p), (p, p)],
                dimension_numbers=("NCHW", "OIHW", "NCHW"),
                precision=lax.Precision.HIGHEST)
            a = jnp.maximum(a + b[None, :, None, None], 0.0)
            if mp > 1:
                Bb, Cc, Hh, Ww = a.shape
                a = a[:, :, :Hh - Hh % mp, :Ww - Ww % mp]
                a = a.reshape(Bb, Cc, Hh // mp, mp, Ww // mp, mp).max(axis=(3, 5))
        return a

    ref = reference_forward(x)
    np.testing.assert_allclose(np.asarray(y), np.asarray(ref),
                               rtol=1e-2, atol=1e-2)
    assert y.shape == (batch, channels[-1], H - 4, W - 4)
    print("KERNEL_OK")
</pallas_src>

<mosaic_0001>
module attributes {stable_mosaic.version = 11 : i64} {
  func.func @_conv_relu_kernel(%arg0: i32, %arg1: memref<1x14x16x128xbf16, #tpu.memory_space<vmem>>, %arg2: memref<1x128x128xbf16, #tpu.memory_space<vmem>>, %arg3: memref<1x128xf32, #tpu.memory_space<vmem>>, %arg4: memref<1x14x16x128xbf16, #tpu.memory_space<vmem>>) attributes {dimension_semantics = [#tpu.dimension_semantics<parallel>], iteration_bounds = array<i64: 2>, scalar_prefetch = 0 : i64, scratch_operands = 0 : i64, tpu.core_type = #tpu.core_type<tc>, window_params = [{transform_indices = @transform_0, window_bounds = array<i64: 1, 14, 16, 128>}, {pipeline_mode = #tpu.pipeline_mode<synchronous>, transform_indices = @transform_1, window_bounds = array<i64: 1, 128, 128>}, {pipeline_mode = #tpu.pipeline_mode<synchronous>, transform_indices = @transform_2, window_bounds = array<i64: 1, 128>}, {transform_indices = @transform_3, window_bounds = array<i64: 1, 14, 16, 128>}]} {
    %c0 = arith.constant 0 : index
    %c0_0 = arith.constant 0 : index
    %0 = vector.load %arg3[%c0, %c0_0] : memref<1x128xf32, #tpu.memory_space<vmem>>, vector<1x128xf32>
    %1 = tpu.iota {dimensions = array<i32: 2>} : vector<1x1x16x1xi32>
    %c14_i32 = arith.constant 14 : i32
    %2 = vector.broadcast %c14_i32 : i32 to vector<1x1x16x1xi32>
    %3 = arith.cmpi slt, %1, %2 : vector<1x1x16x1xi32>
    %4 = arith.extui %3 : vector<1x1x16x1xi1> to vector<1x1x16x1xi32>
    %5 = arith.sitofp %4 : vector<1x1x16x1xi32> to vector<1x1x16x1xf32>
    %cst = arith.constant 0.000000e+00 : f32
    %6 = vector.broadcast %cst : f32 to vector<128x128xf32>
    %c0_1 = arith.constant 0 : index
    %c0_2 = arith.constant 0 : index
    %c0_3 = arith.constant 0 : index
    %c0_4 = arith.constant 0 : index
    %7 = vector.load %arg1[%c0_1, %c0_2, %c0_3, %c0_4] : memref<1x14x16x128xbf16, #tpu.memory_space<vmem>>, vector<1x8x16x128xbf16>
    %8 = vector.shape_cast %7 : vector<1x8x16x128xbf16> to vector<128x128xbf16>
    %c0_5 = arith.constant 0 : index
    %c0_6 = arith.constant 0 : index
    %c0_7 = arith.constant 0 : index
    %9 = vector.load %arg2[%c0_5, %c0_6, %c0_7] : memref<1x128x128xbf16, #tpu.memory_space<vmem>>, vector<1x128x128xbf16>
    %10 = vector.shape_cast %9 : vector<1x128x128xbf16> to vector<128x128xbf16>
    %cst_8 = arith.constant dense<0.000000e+00> : vector<128x128xf32>
    %11 = tpu.matmul %8, %10, %cst_8 {dimension_numbers = #tpu.dot_dimension_numbers<[1], [0], [0], [1], [0, 0, 1, 1], [], []>} : vector<128x128xbf16>, vector<128x128xbf16>, vector<128x128xf32> -> vector<128x128xf32>
    %12 = arith.addf %6, %11 : vector<128x128xf32>
    %13 = vector.broadcast %0 : vector<1x128xf32> to vector<128x128xf32>
    %14 = arith.addf %12, %13 : vector<128x128xf32>
    %cst_9 = arith.constant 0.000000e+00 : f32
    %15 = vector.broadcast %cst_9 : f32 to vector<128x128xf32>
    %16 = arith.maximumf %14, %15 : vector<128x128xf32>
    %17 = vector.shape_cast %16 : vector<128x128xf32> to vector<1x8x16x128xf32>
    %18 = vector.broadcast %5 : vector<1x1x16x1xf32> to vector<1x8x16x128xf32>
    %19 = arith.mulf %17, %18 : vector<1x8x16x128xf32>
    %20 = arith.truncf %19 : vector<1x8x16x128xf32> to vector<1x8x16x128xbf16>
    %c0_10 = arith.constant 0 : index
    %c0_11 = arith.constant 0 : index
    %c0_12 = arith.constant 0 : index
    %c0_13 = arith.constant 0 : index
    %21 = vector.load %arg4[%c0_10, %c0_11, %c0_12, %c0_13] : memref<1x14x16x128xbf16, #tpu.memory_space<vmem>>, vector<1x8x16x128xbf16>
    tpu.vector_store %arg4[%c0_10, %c0_11, %c0_12, %c0_13], %20 {strides = array<i32>} : memref<1x14x16x128xbf16, #tpu.memory_space<vmem>>, vector<1x8x16x128xbf16>,
    %cst_14 = arith.constant 0.000000e+00 : f32
    %22 = vector.broadcast %cst_14 : f32 to vector<96x128xf32>
    %c0_15 = arith.constant 0 : index
    %c8 = arith.constant 8 : index
    %c0_16 = arith.constant 0 : index
    %c0_17 = arith.constant 0 : index
    %23 = vector.load %arg1[%c0_15, %c8, %c0_16, %c0_17] : memref<1x14x16x128xbf16, #tpu.memory_space<vmem>>, vector<1x6x16x128xbf16>
    %24 = vector.shape_cast %23 : vector<1x6x16x128xbf16> to vector<96x128xbf16>
    %c0_18 = arith.constant 0 : index
    %c0_19 = arith.constant 0 : index
    %c0_20 = arith.constant 0 : index
    %25 = vector.load %arg2[%c0_18, %c0_19, %c0_20] : memref<1x128x128xbf16, #tpu.memory_space<vmem>>, vector<1x128x128xbf16>
    %26 = vector.shape_cast %25 : vector<1x128x128xbf16> to vector<128x128xbf16>
    %cst_21 = arith.constant dense<0.000000e+00> : vector<96x128xf32>
    %27 = tpu.matmul %24, %26, %cst_21 {dimension_numbers = #tpu.dot_dimension_numbers<[1], [0], [0], [1], [0, 0, 1, 1], [], []>} : vector<96x128xbf16>, vector<128x128xbf16>, vector<96x128xf32> -> vector<96x128xf32>
    %28 = arith.addf %22, %27 : vector<96x128xf32>
    %29 = vector.broadcast %0 : vector<1x128xf32> to vector<96x128xf32>
    %30 = arith.addf %28, %29 : vector<96x128xf32>
    %cst_22 = arith.constant 0.000000e+00 : f32
    %31 = vector.broadcast %cst_22 : f32 to vector<96x128xf32>
    %32 = arith.maximumf %30, %31 : vector<96x128xf32>
    %33 = vector.shape_cast %32 : vector<96x128xf32> to vector<1x6x16x128xf32>
    %34 = vector.broadcast %5 : vector<1x1x16x1xf32> to vector<1x6x16x128xf32>
    %35 = arith.mulf %33, %34 : vector<1x6x16x128xf32>
    %36 = arith.truncf %35 : vector<1x6x16x128xf32> to vector<1x6x16x128xbf16>
    %c0_23 = arith.constant 0 : index
    %c8_24 = arith.constant 8 : index
    %c0_25 = arith.constant 0 : index
    %c0_26 = arith.constant 0 : index
    %37 = vector.load %arg4[%c0_23, %c8_24, %c0_25, %c0_26] : memref<1x14x16x128xbf16, #tpu.memory_space<vmem>>, vector<1x6x16x128xbf16>
    tpu.vector_store %arg4[%c0_23, %c8_24, %c0_25, %c0_26], %36 {strides = array<i32>} : memref<1x14x16x128xbf16, #tpu.memory_space<vmem>>, vector<1x6x16x128xbf16>,
    return
  }
  func.func @transform_0(%arg0: i32) -> (i32, i32, i32, i32) {
    %c0_i32 = arith.constant 0 : i32
    %c0_i32_0 = arith.constant 0 : i32
    %c0_i32_1 = arith.constant 0 : i32
    %c0_i32_2 = arith.constant 0 : i32
    return %arg0, %c0_i32, %c0_i32_0, %c0_i32_1 : i32, i32, i32, i32
  }
  func.func @transform_1(%arg0: i32) -> (i32, i32, i32) {
    %c0_i32 = arith.constant 0 : i32
    %c0_i32_0 = arith.constant 0 : i32
    %c0_i32_1 = arith.constant 0 : i32
    %c0_i32_2 = arith.constant 0 : i32
    return %c0_i32, %c0_i32_0, %c0_i32_1 : i32, i32, i32
  }
  func.func @transform_2(%arg0: i32) -> (i32, i32) {
    %c0_i32 = arith.constant 0 : i32
    %c0_i32_0 = arith.constant 0 : i32
    %c0_i32_1 = arith.constant 0 : i32
    return %c0_i32, %c0_i32_0 : i32, i32
  }
  func.func @transform_3(%arg0: i32) -> (i32, i32, i32, i32) {
    %c0_i32 = arith.constant 0 : i32
    %c0_i32_0 = arith.constant 0 : i32
    %c0_i32_1 = arith.constant 0 : i32
    %c0_i32_2 = arith.constant 0 : i32
    return %arg0, %c0_i32, %c0_i32_0, %c0_i32_1 : i32, i32, i32, i32
  }
}

module attributes {stable_mosaic.version = 11 : i64} {
  func.func @_conv_relu_kernel(%arg0: i32, %arg1: memref<1x14x16x128xbf16, #tpu.memory_space<vmem>>, %arg2: memref<3x128x128xbf16, #tpu.memory_space<vmem>>, %arg3: memref<1x128xf32, #tpu.memory_space<vmem>>, %arg4: memref<1x12x16x128xbf16, #tpu.memory_space<vmem>>) attributes {dimension_semantics = [#tpu.dimension_semantics<parallel>], iteration_bounds = array<i64: 2>, scalar_prefetch = 0 : i64, scratch_operands = 0 : i64, tpu.core_type = #tpu.core_type<tc>, window_params = [{transform_indices = @transform_0, window_bounds = array<i64: 1, 14, 16, 128>}, {pipeline_mode = #tpu.pipeline_mode<synchronous>, transform_indices = @transform_1, window_bounds = array<i64: 3, 128, 128>}, {pipeline_mode = #tpu.pipeline_mode<synchronous>, transform_indices = @transform_2, window_bounds = array<i64: 1, 128>}, {transform_indices = @transform_3, window_bounds = array<i64: 1, 12, 16, 128>}]} {
    %c0 = arith.constant 0 : index
    %c0_0 = arith.constant 0 : index
    %0 = vector.load %arg3[%c0, %c0_0] : memref<1x128xf32, #tpu.memory_space<vmem>>, vector<1x128xf32>
    %1 = tpu.iota {dimensions = array<i32: 2>} : vector<1x1x16x1xi32>
    %c12_i32 = arith.constant 12 : i32
    %2 = vector.broadcast %c12_i32 : i32 to vector<1x1x16x1xi32>
    %3 = arith.cmpi slt, %1, %2 : vector<1x1x16x1xi32>
    %4 = arith.extui %3 : vector<1x1x16x1xi1> to vector<1x1x16x1xi32>
    %5 = arith.sitofp %4 : vector<1x1x16x1xi32> to vector<1x1x16x1xf32>
    %cst = arith.constant 0.000000e+00 : f32
    %6 = vector.broadcast %cst : f32 to vector<128x128xf32>
    %c0_1 = arith.constant 0 : index
    %c0_2 = arith.constant 0 : index
    %c0_3 = arith.constant 0 : index
    %c0_4 = arith.constant 0 : index
    %7 = vector.load %arg1[%c0_1, %c0_2, %c0_3, %c0_4] : memref<1x14x16x128xbf16, #tpu.memory_space<vmem>>, vector<1x8x16x128xbf16>
    %8 = vector.shape_cast %7 : vector<1x8x16x128xbf16> to vector<128x128xbf16>
    %c0_5 = arith.constant 0 : index
    %c0_6 = arith.constant 0 : index
    %c0_7 = arith.constant 0 : index
    %9 = vector.load %arg2[%c0_5, %c0_6, %c0_7] : memref<3x128x128xbf16, #tpu.memory_space<vmem>>, vector<1x128x128xbf16>
    %10 = vector.shape_cast %9 : vector<1x128x128xbf16> to vector<128x128xbf16>
    %cst_8 = arith.constant dense<0.000000e+00> : vector<128x128xf32>
    %11 = tpu.matmul %8, %10, %cst_8 {dimension_numbers = #tpu.dot_dimension_numbers<[1], [0], [0], [1], [0, 0, 1, 1], [], []>} : vector<128x128xbf16>, vector<128x128xbf16>, vector<128x128xf32> -> vector<128x128xf32>
    %12 = arith.addf %6, %11 : vector<128x128xf32>
    %c0_9 = arith.constant 0 : index
    %c1 = arith.constant 1 : index
    %c0_10 = arith.constant 0 : index
    %c0_11 = arith.constant 0 : index
    %13 = vector.load %arg1[%c0_9, %c1, %c0_10, %c0_11] : memref<1x14x16x128xbf16, #tpu.memory_space<vmem>>, vector<1x8x16x128xbf16>
    %14 = vector.shape_cast %13 : vector<1x8x16x128xbf16> to vector<128x128xbf16>
    %c1_12 = arith.constant 1 : index
    %c0_13 = arith.constant 0 : index
    %c0_14 = arith.constant 0 : index
    %15 = vector.load %arg2[%c1_12, %c0_13, %c0_14] : memref<3x128x128xbf16, #tpu.memory_space<vmem>>, vector<1x128x128xbf16>
    %16 = vector.shape_cast %15 : vector<1x128x128xbf16> to vector<128x128xbf16>
    %cst_15 = arith.constant dense<0.000000e+00> : vector<128x128xf32>
    %17 = tpu.matmul %14, %16, %cst_15 {dimension_numbers = #tpu.dot_dimension_numbers<[1], [0], [0], [1], [0, 0, 1, 1], [], []>} : vector<128x128xbf16>, vector<128x128xbf16>, vector<128x128xf32> -> vector<128x128xf32>
    %18 = arith.addf %12, %17 : vector<128x128xf32>
    %c0_16 = arith.constant 0 : index
    %c2 = arith.constant 2 : index
    %c0_17 = arith.constant 0 : index
    %c0_18 = arith.constant 0 : index
    %19 = vector.load %arg1[%c0_16, %c2, %c0_17, %c0_18] : memref<1x14x16x128xbf16, #tpu.memory_space<vmem>>, vector<1x8x16x128xbf16>
    %20 = vector.shape_cast %19 : vector<1x8x16x128xbf16> to vector<128x128xbf16>
    %c2_19 = arith.constant 2 : index
    %c0_20 = arith.constant 0 : index
    %c0_21 = arith.constant 0 : index
    %21 = vector.load %arg2[%c2_19, %c0_20, %c0_21] : memref<3x128x128xbf16, #tpu.memory_space<vmem>>, vector<1x128x128xbf16>
    %22 = vector.shape_cast %21 : vector<1x128x128xbf16> to vector<128x128xbf16>
    %cst_22 = arith.constant dense<0.000000e+00> : vector<128x128xf32>
    %23 = tpu.matmul %20, %22, %cst_22 {dimension_numbers = #tpu.dot_dimension_numbers<[1], [0], [0], [1], [0, 0, 1, 1], [], []>} : vector<128x128xbf16>, vector<128x128xbf16>, vector<128x128xf32> -> vector<128x128xf32>
    %24 = arith.addf %18, %23 : vector<128x128xf32>
    %25 = vector.broadcast %0 : vector<1x128xf32> to vector<128x128xf32>
    %26 = arith.addf %24, %25 : vector<128x128xf32>
    %cst_23 = arith.constant 0.000000e+00 : f32
    %27 = vector.broadcast %cst_23 : f32 to vector<128x128xf32>
    %28 = arith.maximumf %26, %27 : vector<128x128xf32>
    %29 = vector.shape_cast %28 : vector<128x128xf32> to vector<1x8x16x128xf32>
    %30 = vector.broadcast %5 : vector<1x1x16x1xf32> to vector<1x8x16x128xf32>
    %31 = arith.mulf %29, %30 : vector<1x8x16x128xf32>
    %32 = arith.truncf %31 : vector<1x8x16x128xf32> to vector<1x8x16x128xbf16>
    %c0_24 = arith.constant 0 : index
    %c0_25 = arith.constant 0 : index
    %c0_26 = arith.constant 0 : index
    %c0_27 = arith.constant 0 : index
    %33 = vector.load %arg4[%c0_24, %c0_25, %c0_26, %c0_27] : memref<1x12x16x128xbf16, #tpu.memory_space<vmem>>, vector<1x8x16x128xbf16>
    tpu.vector_store %arg4[%c0_24, %c0_25, %c0_26, %c0_27], %32 {strides = array<i32>} : memref<1x12x16x128xbf16, #tpu.memory_space<vmem>>, vector<1x8x16x128xbf16>,
    %cst_28 = arith.constant 0.000000e+00 : f32
    %34 = vector.broadcast %cst_28 : f32 to vector<64x128xf32>
    %c0_29 = arith.constant 0 : index
    %c8 = arith.constant 8 : index
    %c0_30 = arith.constant 0 : index
    %c0_31 = arith.constant 0 : index
    %35 = vector.load %arg1[%c0_29, %c8, %c0_30, %c0_31] : memref<1x14x16x128xbf16, #tpu.memory_space<vmem>>, vector<1x4x16x128xbf16>
    %36 = vector.shape_cast %35 : vector<1x4x16x128xbf16> to vector<64x128xbf16>
    %c0_32 = arith.constant 0 : index
    %c0_33 = arith.constant 0 : index
    %c0_34 = arith.constant 0 : index
    %37 = vector.load %arg2[%c0_32, %c0_33, %c0_34] : memref<3x128x128xbf16, #tpu.memory_space<vmem>>, vector<1x128x128xbf16>
    %38 = vector.shape_cast %37 : vector<1x128x128xbf16> to vector<128x128xbf16>
    %cst_35 = arith.constant dense<0.000000e+00> : vector<64x128xf32>
    %39 = tpu.matmul %36, %38, %cst_35 {dimension_numbers = #tpu.dot_dimension_numbers<[1], [0], [0], [1], [0, 0, 1, 1], [], []>} : vector<64x128xbf16>, vector<128x128xbf16>, vector<64x128xf32> -> vector<64x128xf32>
    %40 = arith.addf %34, %39 : vector<64x128xf32>
    %c0_36 = arith.constant 0 : index
    %c9 = arith.constant 9 : index
    %c0_37 = arith.constant 0 : index
    %c0_38 = arith.constant 0 : index
    %41 = vector.load %arg1[%c0_36, %c9, %c0_37, %c0_38] : memref<1x14x16x128xbf16, #tpu.memory_space<vmem>>, vector<1x4x16x128xbf16>
    %42 = vector.shape_cast %41 : vector<1x4x16x128xbf16> to vector<64x128xbf16>
    %c1_39 = arith.constant 1 : index
    %c0_40 = arith.constant 0 : index
    %c0_41 = arith.constant 0 : index
    %43 = vector.load %arg2[%c1_39, %c0_40, %c0_41] : memref<3x128x128xbf16, #tpu.memory_space<vmem>>, vector<1x128x128xbf16>
    %44 = vector.shape_cast %43 : vector<1x128x128xbf16> to vector<128x128xbf16>
    %cst_42 = arith.constant dense<0.000000e+00> : vector<64x128xf32>
    %45 = tpu.matmul %42, %44, %cst_42 {dimension_numbers = #tpu.dot_dimension_numbers<[1], [0], [0], [1], [0, 0, 1, 1], [], []>} : vector<64x128xbf16>, vector<128x128xbf16>, vector<64x128xf32> -> vector<64x128xf32>
    %46 = arith.addf %40, %45 : vector<64x128xf32>
    %c0_43 = arith.constant 0 : index
    %c10 = arith.constant 10 : index
    %c0_44 = arith.constant 0 : index
    %c0_45 = arith.constant 0 : index
    %47 = vector.load %arg1[%c0_43, %c10, %c0_44, %c0_45] : memref<1x14x16x128xbf16, #tpu.memory_space<vmem>>, vector<1x4x16x128xbf16>
    %48 = vector.shape_cast %47 : vector<1x4x16x128xbf16> to vector<64x128xbf16>
    %c2_46 = arith.constant 2 : index
    %c0_47 = arith.constant 0 : index
    %c0_48 = arith.constant 0 : index
    %49 = vector.load %arg2[%c2_46, %c0_47, %c0_48] : memref<3x128x128xbf16, #tpu.memory_space<vmem>>, vector<1x128x128xbf16>
    %50 = vector.shape_cast %49 : vector<1x128x128xbf16> to vector<128x128xbf16>
    %cst_49 = arith.constant dense<0.000000e+00> : vector<64x128xf32>
    %51 = tpu.matmul %48, %50, %cst_49 {dimension_numbers = #tpu.dot_dimension_numbers<[1], [0], [0], [1], [0, 0, 1, 1], [], []>} : vector<64x128xbf16>, vector<128x128xbf16>, vector<64x128xf32> -> vector<64x128xf32>
    %52 = arith.addf %46, %51 : vector<64x128xf32>
    %53 = vector.broadcast %0 : vector<1x128xf32> to vector<64x128xf32>
    %54 = arith.addf %52, %53 : vector<64x128xf32>
    %cst_50 = arith.constant 0.000000e+00 : f32
    %55 = vector.broadcast %cst_50 : f32 to vector<64x128xf32>
    %56 = arith.maximumf %54, %55 : vector<64x128xf32>
    %57 = vector.shape_cast %56 : vector<64x128xf32> to vector<1x4x16x128xf32>
    %58 = vector.broadcast %5 : vector<1x1x16x1xf32> to vector<1x4x16x128xf32>
    %59 = arith.mulf %57, %58 : vector<1x4x16x128xf32>
    %60 = arith.truncf %59 : vector<1x4x16x128xf32> to vector<1x4x16x128xbf16>
    %c0_51 = arith.constant 0 : index
    %c8_52 = arith.constant 8 : index
    %c0_53 = arith.constant 0 : index
    %c0_54 = arith.constant 0 : index
    %61 = vector.load %arg4[%c0_51, %c8_52, %c0_53, %c0_54] : memref<1x12x16x128xbf16, #tpu.memory_space<vmem>>, vector<1x4x16x128xbf16>
    tpu.vector_store %arg4[%c0_51, %c8_52, %c0_53, %c0_54], %60 {strides = array<i32>} : memref<1x12x16x128xbf16, #tpu.memory_space<vmem>>, vector<1x4x16x128xbf16>,
    return
  }
  func.func @transform_0(%arg0: i32) -> (i32, i32, i32, i32) {
    %c0_i32 = arith.constant 0 : i32
    %c0_i32_0 = arith.constant 0 : i32
    %c0_i32_1 = arith.constant 0 : i32
    %c0_i32_2 = arith.constant 0 : i32
    return %arg0, %c0_i32, %c0_i32_0, %c0_i32_1 : i32, i32, i32, i32
  }
  func.func @transform_1(%arg0: i32) -> (i32, i32, i32) {
    %c0_i32 = arith.constant 0 : i32
    %c0_i32_0 = arith.constant 0 : i32
    %c0_i32_1 = arith.constant 0 : i32
    %c0_i32_2 = arith.constant 0 : i32
    return %c0_i32, %c0_i32_0, %c0_i32_1 : i32, i32, i32
  }
  func.func @transform_2(%arg0: i32) -> (i32, i32) {
    %c0_i32 = arith.constant 0 : i32
    %c0_i32_0 = arith.constant 0 : i32
    %c0_i32_1 = arith.constant 0 : i32
    return %c0_i32, %c0_i32_0 : i32, i32
  }
  func.func @transform_3(%arg0: i32) -> (i32, i32, i32, i32) {
    %c0_i32 = arith.constant 0 : i32
    %c0_i32_0 = arith.constant 0 : i32
    %c0_i32_1 = arith.constant 0 : i32
    %c0_i32_2 = arith.constant 0 : i32
    return %arg0, %c0_i32, %c0_i32_0, %c0_i32_1 : i32, i32, i32, i32
  }
}

</mosaic_0001>

<llo_original>
// kernel: conv2d_model_forward.2
$region0: #{conv2d_model_forward.2}
  #allocation0 [shape = 'u32[]', space=smem, size = 0x4, offset = 0x4, fixed_abs, tag = 'smem constant byte address 0x4 - core index']
  #allocation1 [shape = 'u32[144,128]{1,0:T(1,128)}', space=vmem, size = 0x12000, scoped, tag = 'internal scratch']
  %s0 = inlined_call_operand.vmem [shape: bf16[2,14,16,128], index: 0, kind: input, shape index: {}]
  %s1 = inlined_call_operand.vmem [shape: bf16[1,128,128], index: 1, kind: input, shape index: {}]
  %s2 = inlined_call_operand.vmem [shape: f32[1,128], index: 2, kind: input, shape index: {}]
  %s3 = inlined_call_operand.vmem [shape: bf16[2,14,16,128], index: 3, kind: output, shape index: {}]
  %s4 = sld [smem:[#allocation0]]
  $region45: #{conv2d_model_forward.2} parent=0
    _
  %s6 = ssub.s32 1, %s4
  %s7 = scalar_select 0, %s6, %s4
  loop: start=0, step=1, limit=4
  $region2: #{conv2d_model_forward.2} parent=0 // loop_pre_header
    _
  $region3: #{conv2d_model_forward.2} parent=0 // loop_header
    %s9 = sphi 0, %s13
    %p10 = scmp.ge.s32.totalorder %s9, 4
    %s19 = sphi 0, %s21
    %s22 = sphi 0, %s19
    %s23 = sphi 0, %s22
    %s39 = sphi 0, %s23
    %s43 = sphi 0, %s43
    %s45 = sphi 0, %s43
    %s46 = sphi 0, %s45
    %s60 = sphi 0, %s46
    %s64 = sphi 0, %s64
    %s66 = sphi 0, %s64
    %s67 = sphi 0, %s66
    %s81 = sphi 0, %s67
    %s87 = sphi 0, %s89
    %s90 = sphi 0, %s87
    %s91 = sphi 0, %s90
    %s107 = sphi 0, %s91
  $region4: #{conv2d_model_forward.2} parent=0 // loop_header_branch
    %12 = sbr.rel (%p10) target = $region8
  $region5: #{conv2d_model_forward.2} parent=0 // loop_body
    %s14 = ssub.s32 %s9, 1
    %s15 = ssub.s32 %s9, 2
    %s16 = sadd.s32 %s9, 1
    %s17 = ssub.s32 %s9, %s16
    %p18 = scmp.eq.s32.totalorder %s17, 0
    %s20 = sadd.s32 %s19, 1
    %s21 = scalar_select %p18, %s19, %s20
    %p24 = pneg %p18
    %p25 = scmp.eq.s32.totalorder %s9, 1
    %p26 = por %p24, %p25
    %p27 = scmp.ne.s32.totalorder %s19, %s22
    %p28 = scmp.eq.s32.totalorder %s9, 0
    %p29 = por %p27, %p28
    %p30 = scmp.ne.s32.totalorder %s19, %s22
    %p31 = scmp.eq.s32.totalorder %s14, 1
    %p32 = por %p30, %p31
    %p33 = scmp.ne.s32.totalorder %s22, %s23
    %p34 = scmp.eq.s32.totalorder %s14, 0
    %p35 = por %p33, %p34
    %p36 = scmp.ne.s32.totalorder %s22, %s23
    %p37 = scmp.eq.s32.totalorder %s15, 1
    %p38 = por %p36, %p37
    %p40 = scmp.ne.s32.totalorder %s23, %s39
    %p41 = scmp.eq.s32.totalorder %s15, 0
    %p42 = por %p40, %p41
    %s44 = sadd.s32 %s43, 1
    %p47 = scmp.eq.s32.totalorder %s9, 1
    %p48 = scmp.ne.s32.totalorder %s43, %s45
    %p49 = scmp.eq.s32.totalorder %s9, 0
    %p50 = por %p48, %p49
    %p51 = scmp.ne.s32.totalorder %s43, %s45
    %p52 = scmp.eq.s32.totalorder %s14, 1
    %p53 = por %p51, %p52
    %p54 = scmp.ne.s32.totalorder %s45, %s46
    %p55 = scmp.eq.s32.totalorder %s14, 0
    %p56 = por %p54, %p55
    %p57 = scmp.ne.s32.totalorder %s45, %s46
    %p58 = scmp.eq.s32.totalorder %s15, 1
    %p59 = por %p57, %p58
    %p61 = scmp.ne.s32.totalorder %s46, %s60
    %p62 = scmp.eq.s32.totalorder %s15, 0
    %p63 = por %p61, %p62
    %s65 = sadd.s32 %s64, 1
    %p68 = scmp.eq.s32.totalorder %s9, 1
    %p69 = scmp.ne.s32.totalorder %s64, %s66
    %p70 = scmp.eq.s32.totalorder %s9, 0
    %p71 = por %p69, %p70
    %p72 = scmp.ne.s32.totalorder %s64, %s66
    %p73 = scmp.eq.s32.totalorder %s14, 1
    %p74 = por %p72, %p73
    %p75 = scmp.ne.s32.totalorder %s66, %s67
    %p76 = scmp.eq.s32.totalorder %s14, 0
    %p77 = por %p75, %p76
    %p78 = scmp.ne.s32.totalorder %s66, %s67
    %p79 = scmp.eq.s32.totalorder %s15, 1
    %p80 = por %p78, %p79
    %p82 = scmp.ne.s32.totalorder %s67, %s81
    %p83 = scmp.eq.s32.totalorder %s15, 0
    %p84 = por %p82, %p83
    %s85 = ssub.s32 %s9, %s16
    %p86 = scmp.eq.s32.totalorder %s85, 0
    %s88 = sadd.s32 %s87, 1
    %s89 = scalar_select %p86, %s87, %s88
    %p92 = pneg %p86
    %p93 = scmp.eq.s32.totalorder %s9, 1
    %p94 = por %p92, %p93
    %p95 = scmp.ne.s32.totalorder %s87, %s90
    %p96 = scmp.eq.s32.totalorder %s9, 0
    %p97 = por %p95, %p96
    %p98 = scmp.ne.s32.totalorder %s87, %s90
    %p99 = scmp.eq.s32.totalorder %s14, 1
    %p100 = por %p98, %p99
    %p101 = scmp.ne.s32.totalorder %s90, %s91
    %p102 = scmp.eq.s32.totalorder %s14, 0
    %p103 = por %p101, %p102
    %p104 = scmp.ne.s32.totalorder %s90, %s91
    %p105 = scmp.eq.s32.totalorder %s15, 1
    %p106 = por %p104, %p105
    %p108 = scmp.ne.s32.totalorder %s91, %s107
    %p109 = scmp.eq.s32.totalorder %s15, 0
    %p110 = por %p108, %p109
    %p111 = scmp.le.s32.totalorder 1, %s9
    %p112 = scmp.lt.s32.totalorder %s9, 3
    %p113 = pnand %p111, %p112
    %p114 = pneg %p113
    // Predicated region
    $region9: #{conv2d_model_forward.2} parent=5 // pred_check
      _
    $region10: #{conv2d_model_forward.2} parent=5 // pred_check_branch
      %116 = sbr.rel (%p113) target = $region12
    $region11: #{conv2d_model_forward.2} parent=5 // pred_region
      %s117 = ssub.s32 %s9, 1
      // Predicated region
      $region13: #{conv2d_model_forward.2} parent=11 // pred_check
        %p118 = pneg %p56
      $region14: #{conv2d_model_forward.2} parent=11 // pred_check_branch
        %120 = sbr.rel (%p118) target = $region16
      $region15: #{conv2d_model_forward.2} parent=11 // pred_region
        _
      $region16: #{conv2d_model_forward.2} parent=11 // pred_fallthru
        _
      // Predicated region
      $region17: #{conv2d_model_forward.2} parent=11 // pred_check
        %p121 = pneg %p77
      $region18: #{conv2d_model_forward.2} parent=11 // pred_check_branch
        %123 = sbr.rel (%p121) target = $region20
      $region19: #{conv2d_model_forward.2} parent=11 // pred_region
        _
      $region20: #{conv2d_model_forward.2} parent=11 // pred_fallthru
        _
    $region12: #{conv2d_model_forward.2} parent=5 // pred_fallthru
      _
    %p124 = scmp.lt.s32.totalorder %s9, 2
    // Predicated region
    $region21: #{conv2d_model_forward.2} parent=5 // pred_check
      %p125 = pneg %p124
    $region22: #{conv2d_model_forward.2} parent=5 // pred_check_branch
      %127 = sbr.rel (%p125) target = $region24
    $region23: #{conv2d_model_forward.2} parent=5 // pred_region
      // Predicated region
      $region25: #{conv2d_model_forward.2} parent=23 // pred_check
        %p128 = pneg %p29
      $region26: #{conv2d_model_forward.2} parent=23 // pred_check_branch
        %130 = sbr.rel (%p128) target = $region28
      $region27: #{conv2d_model_forward.2} parent=23 // pred_region
        %p131 = scmp.lt.s32.totalorder %s9, 1
        %s132 = scalar_select %p131, %s9, 1
        %s133 = smul.addr %s132, 28
        %s134 = smul.addr %s133, 4
        %s135 = scalar_lea.vmem %s0, %s134
      $region28: #{conv2d_model_forward.2} parent=23 // pred_fallthru
        _
    $region24: #{conv2d_model_forward.2} parent=5 // pred_fallthru
      _
    %p136 = scmp.le.s32.totalorder 1, %s9
    %p137 = scmp.lt.s32.totalorder %s9, 3
    %p138 = pnand %p136, %p137
    %p139 = pneg %p138
    // Predicated region
    $region29: #{conv2d_model_forward.2} parent=5 // pred_check
      _
    $region30: #{conv2d_model_forward.2} parent=5 // pred_check_branch
      %141 = sbr.rel (%p138) target = $region32
    $region31: #{conv2d_model_forward.2} parent=5 // pred_region
      %s142 = ssub.s32 %s9, 1
      %p143 = scmp.lt.s32.totalorder %s14, 1
      %s144 = scalar_select %p143, %s14, 1
      %s145 = smul.addr %s144, 28
      %s146 = smul.addr %s145, 4
      %s147 = scalar_lea.vmem %s0, %s146
      %p148 = pneg %p35
      %p149 = pneg %p32
      %p150 = pneg %p56
      %p151 = pneg %p53
      %p152 = pneg %p77
      %p153 = pneg %p74
      %p154 = pneg %p103
      %p155 = pneg %p100
      %p156 = scmp.lt.s32.totalorder %s14, 1
      %s157 = scalar_select %p156, %s14, 1
      %s158 = smul.addr %s157, 28
      %s159 = smul.addr %s158, 4
      %s160 = scalar_lea.vmem %s3, %s159
      %p161 = scmp.lt.s32.totalorder %s14, 1
      %s162 = scalar_select %p161, %s14, 1
      %s163 = smul.addr %s162, 28
      %s164 = smul.addr %s163, 4
      %s165 = scalar_lea.vmem %s0, %s164
      %p166 = scmp.lt.s32.totalorder %s14, 1
      %s167 = scalar_select %p166, %s14, 1
      %s168 = smul.addr %s167, 28
      %s169 = smul.addr %s168, 4
      %s170 = scalar_lea.vmem %s3, %s169
      %v172 = vld [vmem:[%s2] sm:$0x1]
      %v173 = vlaneseq
      %v174 = vshrl.u32 %v173, 7
      %v175 = vadd.s32 %v174, 8
      %vm176 = vcmp.lt.s32.totalorder %v174, 14
      %vm177 = vcmp.lt.s32.totalorder %v175, 14
      %v178 = vsel %vm176, 1, 0
      %v179 = vsel %vm177, 1, 0
      %v180 = vcvt.s32.f32 %v178
      %v181 = vcvt.s32.f32 %v179
      %v182 = vld [vmem:[%s165] sm:$0xf]
      %v183 = vld [vmem:[%s165 + $0x4] sm:$0xf]
      %v184 = vld [vmem:[%s165 + $0x8] sm:$0xf]
      %v185 = vld [vmem:[%s165 + $0xc] sm:$0xf]
      %v186 = vld [vmem:[%s165 + $0x10] sm:$0xf]
      %v187 = vld [vmem:[%s165 + $0x14] sm:$0xf]
      %v188 = vld [vmem:[%s165 + $0x18] sm:$0xf]
      %v189 = vld [vmem:[%s165 + $0x1c] sm:$0xf]
      %v190 = vld [vmem:[%s165 + $0x20] sm:$0xf]
      %v191 = vld [vmem:[%s165 + $0x24] sm:$0xf]
      %v192 = vld [vmem:[%s165 + $0x28] sm:$0xf]
      %v193 = vld [vmem:[%s165 + $0x2c] sm:$0xf]
      %v194 = vld [vmem:[%s165 + $0x30] sm:$0xf]
      %v195 = vld [vmem:[%s165 + $0x34] sm:$0xf]
      %v196 = vld [vmem:[%s165 + $0x38] sm:$0xf]
      %v197 = vld [vmem:[%s165 + $0x3c] sm:$0xf]
      %v198 = vld [vmem:[%s1] sm:$0xf]
      %v199 = vld [vmem:[%s1 + $0x4] sm:$0xf]
      %v200 = vld [vmem:[%s1 + $0x8] sm:$0xf]
      %v201 = vld [vmem:[%s1 + $0xc] sm:$0xf]
      %v202 = vld [vmem:[%s1 + $0x10] sm:$0xf]
      %v203 = vld [vmem:[%s1 + $0x14] sm:$0xf]
      %v204 = vld [vmem:[%s1 + $0x18] sm:$0xf]
      %v205 = vld [vmem:[%s1 + $0x1c] sm:$0xf]
      %v206 = vld [vmem:[%s1 + $0x20] sm:$0xf]
      %v207 = vld [vmem:[%s1 + $0x24] sm:$0xf]
      %v208 = vld [vmem:[%s1 + $0x28] sm:$0xf]
      %v209 = vld [vmem:[%s1 + $0x2c] sm:$0xf]
      %v210 = vld [vmem:[%s1 + $0x30] sm:$0xf]
      %v211 = vld [vmem:[%s1 + $0x34] sm:$0xf]
      %v212 = vld [vmem:[%s1 + $0x38] sm:$0xf]
      %v213 = vld [vmem:[%s1 + $0x3c] sm:$0xf]
      %v215 = vlaneseq
      %v216 = vshrl.u32 %v215, 7
      %v217 = vsub.s32 0, %v216
      %v218 = vrot.slane %v172, %v217
      %v236 = vunpack.c.l.b16 %v182
      %v237 = vunpack.c.l.b16 %v183
      %v238 = vunpack.c.l.b16 %v184
      %v239 = vunpack.c.l.b16 %v185
      %v240 = vunpack.c.l.b16 %v186
      %v241 = vunpack.c.l.b16 %v187
      %v242 = vunpack.c.l.b16 %v188
      %v243 = vunpack.c.l.b16 %v189
      %v244 = vunpack.c.l.b16 %v190
      %v245 = vunpack.c.l.b16 %v191
      %v246 = vunpack.c.l.b16 %v192
      %v247 = vunpack.c.l.b16 %v193
      %v248 = vunpack.c.l.b16 %v194
      %v249 = vunpack.c.l.b16 %v195
      %v250 = vunpack.c.l.b16 %v196
      %v251 = vunpack.c.l.b16 %v197
      %v252 = vpack.c.b16 %v237, %v236
      %v253 = vpack.c.b16 %v239, %v238
      %v254 = vpack.c.b16 %v241, %v240
      %v255 = vpack.c.b16 %v243, %v242
      %v256 = vpack.c.b16 %v245, %v244
      %v257 = vpack.c.b16 %v247, %v246
      %v258 = vpack.c.b16 %v249, %v248
      %v259 = vpack.c.b16 %v251, %v250
      %v284 = vunpack.c.l.b16 %v198
      %v285 = vunpack.c.l.b16 %v199
      %v286 = vunpack.c.l.b16 %v200
      %v287 = vunpack.c.l.b16 %v201
      %v288 = vunpack.c.l.b16 %v202
      %v289 = vunpack.c.l.b16 %v203
      %v290 = vunpack.c.l.b16 %v204
      %v291 = vunpack.c.l.b16 %v205
      %v292 = vunpack.c.l.b16 %v206
      %v293 = vunpack.c.l.b16 %v207
      %v294 = vunpack.c.l.b16 %v208
      %v295 = vunpack.c.l.b16 %v209
      %v296 = vunpack.c.l.b16 %v210
      %v297 = vunpack.c.l.b16 %v211
      %v298 = vunpack.c.l.b16 %v212
      %v299 = vunpack.c.l.b16 %v213
      %v300 = vpack.c.b16 %v285, %v284
      %v301 = vpack.c.b16 %v287, %v286
      %v302 = vpack.c.b16 %v289, %v288
      %v303 = vpack.c.b16 %v291, %v290
      %v304 = vpack.c.b16 %v293, %v292
      %v305 = vpack.c.b16 %v295, %v294
      %v306 = vpack.c.b16 %v297, %v296
      %v307 = vpack.c.b16 %v299, %v298
      %316 = vmatprep.subr.bf16.mxu0 0
      %317 = vmatpush1.bf16.msra.mxu0 %v300
      %318 = vmatprep.subr.bf16.mxu0 0
      %319 = vmatpush1.bf16.msra.mxu0 %v301
      %320 = vmatprep.subr.bf16.mxu0 0
      %321 = vmatpush1.bf16.msra.mxu0 %v302
      %322 = vmatprep.subr.bf16.mxu0 0
      %323 = vmatpush1.bf16.msra.mxu0 %v303
      %324 = vmatprep.subr.bf16.mxu0 0
      %325 = vmatpush1.bf16.msra.mxu0 %v304
      %326 = vmatprep.subr.bf16.mxu0 0
      %327 = vmatpush1.bf16.msra.mxu0 %v305
      %328 = vmatprep.subr.bf16.mxu0 0
      %329 = vmatpush1.bf16.msra.mxu0 %v306
      %330 = vmatprep.subr.bf16.mxu0 0
      %331 = vmatpush1.bf16.msra.mxu0 %v307
      %332 = vmatprep.subr.bf16.mxu0 0
      %333 = vmatpush1.bf16.msra.mxu0 0
      %334 = vmatprep.subr.bf16.mxu0 0
      %335 = vmatpush1.bf16.msra.mxu0 0
      %336 = vmatprep.subr.bf16.mxu0 0
      %337 = vmatpush1.bf16.msra.mxu0 0
      %338 = vmatprep.subr.bf16.mxu0 0
      %339 = vmatpush1.bf16.msra.mxu0 0
      %340 = vmatprep.subr.bf16.mxu0 0
      %341 = vmatpush1.bf16.msra.mxu0 0
      %342 = vmatprep.subr.bf16.mxu0 0
      %343 = vmatpush1.bf16.msra.mxu0 0
      %344 = vmatprep.subr.bf16.mxu0 0
      %345 = vmatpush1.bf16.msra.mxu0 0
      %346 = vmatprep.subr.bf16.mxu0 0
      %347 = vmatpush1.bf16.msra.mxu0 0
      %348 = vmatprep.mubr.bf16.mxu0 0
      %349 = vmatmul.mubr.bf16.gmra.mrb[0].mxu0 %v252
      %v350 = vpop.f32.mrb[0].mxu0
      %v351 = vadd.f32 %v218, %v350
      %v352 = vpop.f32.mrb[0].mxu0
      %v353 = vpop.f32.mrb[0].mxu0
      %v354 = vadd.f32 %v218, %v353
      %v355 = vpop.f32.mrb[0].mxu0
      %356 = vmatprep.mubr.bf16.mxu0 0
      %357 = vmatmul.mubr.bf16.gmra.mrb[0].mxu0 %v253
      %v358 = vpop.f32.mrb[0].mxu0
      %v359 = vadd.f32 %v218, %v358
      %v360 = vpop.f32.mrb[0].mxu0
      %v361 = vpop.f32.mrb[0].mxu0
      %v362 = vadd.f32 %v218, %v361
      %v363 = vpop.f32.mrb[0].mxu0
      %364 = vmatprep.mubr.bf16.mxu0 0
      %365 = vmatmul.mubr.bf16.gmra.mrb[0].mxu0 %v254
      %v366 = vpop.f32.mrb[0].mxu0
      %v367 = vadd.f32 %v218, %v366
      %v368 = vpop.f32.mrb[0].mxu0
      %v369 = vpop.f32.mrb[0].mxu0
      %v370 = vadd.f32 %v218, %v369
      %v371 = vpop.f32.mrb[0].mxu0
      %372 = vmatprep.mubr.bf16.mxu0 0
      %373 = vmatmul.mubr.bf16.gmra.mrb[0].mxu0 %v255
      %v374 = vpop.f32.mrb[0].mxu0
      %v375 = vadd.f32 %v218, %v374
      %v376 = vpop.f32.mrb[0].mxu0
      %v377 = vpop.f32.mrb[0].mxu0
      %v378 = vadd.f32 %v218, %v377
      %v379 = vpop.f32.mrb[0].mxu0
      %380 = vmatprep.mubr.bf16.mxu0 0
      %381 = vmatmul.mubr.bf16.gmra.mrb[0].mxu0 %v256
      %v382 = vpop.f32.mrb[0].mxu0
      %v383 = vadd.f32 %v218, %v382
      %v384 = vpop.f32.mrb[0].mxu0
      %v385 = vpop.f32.mrb[0].mxu0
      %v386 = vadd.f32 %v218, %v385
      %v387 = vpop.f32.mrb[0].mxu0
      %388 = vmatprep.mubr.bf16.mxu0 0
      %389 = vmatmul.mubr.bf16.gmra.mrb[0].mxu0 %v257
      %v390 = vpop.f32.mrb[0].mxu0
      %v391 = vadd.f32 %v218, %v390
      %v392 = vpop.f32.mrb[0].mxu0
      %v393 = vpop.f32.mrb[0].mxu0
      %v394 = vadd.f32 %v218, %v393
      %v395 = vpop.f32.mrb[0].mxu0
      %396 = vmatprep.mubr.bf16.mxu0 0
      %397 = vmatmul.mubr.bf16.gmra.mrb[0].mxu0 %v258
      %v398 = vpop.f32.mrb[0].mxu0
      %v399 = vadd.f32 %v218, %v398
      %v400 = vpop.f32.mrb[0].mxu0
      %v401 = vpop.f32.mrb[0].mxu0
      %v402 = vadd.f32 %v218, %v401
      %v403 = vpop.f32.mrb[0].mxu0
      %404 = vmatprep.mubr.bf16.mxu0 0
      %405 = vmatmul.mubr.bf16.gmra.mrb[0].mxu0 %v259
      %v406 = vpop.f32.mrb[0].mxu0
      %v407 = vadd.f32 %v218, %v406
      %v408 = vpop.f32.mrb[0].mxu0
      %v409 = vpop.f32.mrb[0].mxu0
      %v410 = vadd.f32 %v218, %v409
      %v411 = vpop.f32.mrb[0].mxu0
      %412 = vdwg.mxu0
      %v413 = vmax.f32 %v351, 0.0
      %v414 = vmax.f32 %v354, 0.0
      %v415 = vmax.f32 %v359, 0.0
      %v416 = vmax.f32 %v362, 0.0
      %v417 = vmax.f32 %v367, 0.0
      %v418 = vmax.f32 %v370, 0.0
      %v419 = vmax.f32 %v375, 0.0
      %v420 = vmax.f32 %v378, 0.0
      %v421 = vmax.f32 %v383, 0.0
      %v422 = vmax.f32 %v386, 0.0
      %v423 = vmax.f32 %v391, 0.0
      %v424 = vmax.f32 %v394, 0.0
      %v425 = vmax.f32 %v399, 0.0
      %v426 = vmax.f32 %v402, 0.0
      %v427 = vmax.f32 %v407, 0.0
      %v428 = vmax.f32 %v410, 0.0
      %v429 = vmul.f32 %v413, %v180
      %v430 = vmul.f32 %v414, %v181
      %v431 = vmul.f32 %v415, %v180
      %v432 = vmul.f32 %v416, %v181
      %v433 = vmul.f32 %v417, %v180
      %v434 = vmul.f32 %v418, %v181
      %v435 = vmul.f32 %v419, %v180
      %v436 = vmul.f32 %v420, %v181
      %v437 = vmul.f32 %v421, %v180
      %v438 = vmul.f32 %v422, %v181
      %v439 = vmul.f32 %v423, %v180
      %v440 = vmul.f32 %v424, %v181
      %v441 = vmul.f32 %v425, %v180
      %v442 = vmul.f32 %v426, %v181
      %v443 = vmul.f32 %v427, %v180
      %v444 = vmul.f32 %v428, %v181
      %v445 = vpack.c.bf16 %v430, %v429
      %v446 = vpack.c.bf16 %v432, %v431
      %v447 = vpack.c.bf16 %v434, %v433
      %v448 = vpack.c.bf16 %v436, %v435
      %v449 = vpack.c.bf16 %v438, %v437
      %v450 = vpack.c.bf16 %v440, %v439
      %v451 = vpack.c.bf16 %v442, %v441
      %v452 = vpack.c.bf16 %v444, %v443
      %v461 = vunpack.c.l.b16 %v445
      %v462 = vunpack.c.h.b16 %v445
      %v463 = vunpack.c.l.b16 %v446
      %v464 = vunpack.c.h.b16 %v446
      %v465 = vunpack.c.l.b16 %v447
      %v466 = vunpack.c.h.b16 %v447
      %v467 = vunpack.c.l.b16 %v448
      %v468 = vunpack.c.h.b16 %v448
      %v469 = vunpack.c.l.b16 %v449
      %v470 = vunpack.c.h.b16 %v449
      %v471 = vunpack.c.l.b16 %v450
      %v472 = vunpack.c.h.b16 %v450
      %v473 = vunpack.c.l.b16 %v451
      %v474 = vunpack.c.h.b16 %v451
      %v475 = vunpack.c.l.b16 %v452
      %v476 = vunpack.c.h.b16 %v452
      %v477 = vpack.c.b16 %v461, %v461
      %v478 = vpack.c.b16 %v462, %v462
      %v479 = vpack.c.b16 %v463, %v463
      %v480 = vpack.c.b16 %v464, %v464
      %v481 = vpack.c.b16 %v465, %v465
      %v482 = vpack.c.b16 %v466, %v466
      %v483 = vpack.c.b16 %v467, %v467
      %v484 = vpack.c.b16 %v468, %v468
      %v485 = vpack.c.b16 %v469, %v469
      %v486 = vpack.c.b16 %v470, %v470
      %v487 = vpack.c.b16 %v471, %v471
      %v488 = vpack.c.b16 %v472, %v472
      %v489 = vpack.c.b16 %v473, %v473
      %v490 = vpack.c.b16 %v474, %v474
      %v491 = vpack.c.b16 %v475, %v475
      %v492 = vpack.c.b16 %v476, %v476
      %509 = vst [vmem:[%s170] sm:$0xf] %v477
      %510 = vst [vmem:[%s170 + $0x4] sm:$0xf] %v478
      %511 = vst [vmem:[%s170 + $0x8] sm:$0xf] %v479
      %512 = vst [vmem:[%s170 + $0xc] sm:$0xf] %v480
      %513 = vst [vmem:[%s170 + $0x10] sm:$0xf] %v481
      %514 = vst [vmem:[%s170 + $0x14] sm:$0xf] %v482
      %515 = vst [vmem:[%s170 + $0x18] sm:$0xf] %v483
      %516 = vst [vmem:[%s170 + $0x1c] sm:$0xf] %v484
      %517 = vst [vmem:[%s170 + $0x20] sm:$0xf] %v485
      %518 = vst [vmem:[%s170 + $0x24] sm:$0xf] %v486
      %519 = vst [vmem:[%s170 + $0x28] sm:$0xf] %v487
      %520 = vst [vmem:[%s170 + $0x2c] sm:$0xf] %v488
      %521 = vst [vmem:[%s170 + $0x30] sm:$0xf] %v489
      %522 = vst [vmem:[%s170 + $0x34] sm:$0xf] %v490
      %523 = vst [vmem:[%s170 + $0x38] sm:$0xf] %v491
      %524 = vst [vmem:[%s170 + $0x3c] sm:$0xf] %v492
      %s525 = scalar_lea.vmem %s165, 64
      %v526 = vld [vmem:[%s525] sm:$0xf]
      %v527 = vld [vmem:[%s525 + $0x4] sm:$0xf]
      %v528 = vld [vmem:[%s525 + $0x8] sm:$0xf]
      %v529 = vld [vmem:[%s525 + $0xc] sm:$0xf]
      %v530 = vld [vmem:[%s525 + $0x10] sm:$0xf]
      %v531 = vld [vmem:[%s525 + $0x14] sm:$0xf]
      %v532 = vld [vmem:[%s525 + $0x18] sm:$0xf]
      %v533 = vld [vmem:[%s525 + $0x1c] sm:$0xf]
      %v534 = vld [vmem:[%s525 + $0x20] sm:$0xf]
      %v535 = vld [vmem:[%s525 + $0x24] sm:$0xf]
      %v536 = vld [vmem:[%s525 + $0x28] sm:$0xf]
      %v537 = vld [vmem:[%s525 + $0x2c] sm:$0xf]
      %v538 = vld [vmem:[%s1] sm:$0xf]
      %v539 = vld [vmem:[%s1 + $0x4] sm:$0xf]
      %v540 = vld [vmem:[%s1 + $0x8] sm:$0xf]
      %v541 = vld [vmem:[%s1 + $0xc] sm:$0xf]
      %v542 = vld [vmem:[%s1 + $0x10] sm:$0xf]
      %v543 = vld [vmem:[%s1 + $0x14] sm:$0xf]
      %v544 = vld [vmem:[%s1 + $0x18] sm:$0xf]
      %v545 = vld [vmem:[%s1 + $0x1c] sm:$0xf]
      %v546 = vld [vmem:[%s1 + $0x20] sm:$0xf]
      %v547 = vld [vmem:[%s1 + $0x24] sm:$0xf]
      %v548 = vld [vmem:[%s1 + $0x28] sm:$0xf]
      %v549 = vld [vmem:[%s1 + $0x2c] sm:$0xf]
      %v550 = vld [vmem:[%s1 + $0x30] sm:$0xf]
      %v551 = vld [vmem:[%s1 + $0x34] sm:$0xf]
      %v552 = vld [vmem:[%s1 + $0x38] sm:$0xf]
      %v553 = vld [vmem:[%s1 + $0x3c] sm:$0xf]
      %v566 = vunpack.c.l.b16 %v526
      %v567 = vunpack.c.l.b16 %v527
      %v568 = vunpack.c.l.b16 %v528
      %v569 = vunpack.c.l.b16 %v529
      %v570 = vunpack.c.l.b16 %v530
      %v571 = vunpack.c.l.b16 %v531
      %v572 = vunpack.c.l.b16 %v532
      %v573 = vunpack.c.l.b16 %v533
      %v574 = vunpack.c.l.b16 %v534
      %v575 = vunpack.c.l.b16 %v535
      %v576 = vunpack.c.l.b16 %v536
      %v577 = vunpack.c.l.b16 %v537
      %v578 = vpack.c.b16 %v567, %v566
      %v579 = vpack.c.b16 %v569, %v568
      %v580 = vpack.c.b16 %v571, %v570
      %v581 = vpack.c.b16 %v573, %v572
      %v582 = vpack.c.b16 %v575, %v574
      %v583 = vpack.c.b16 %v577, %v576
      %v606 = vunpack.c.l.b16 %v538
      %v607 = vunpack.c.l.b16 %v539
      %v608 = vunpack.c.l.b16 %v540
      %v609 = vunpack.c.l.b16 %v541
      %v610 = vunpack.c.l.b16 %v542
      %v611 = vunpack.c.l.b16 %v543
      %v612 = vunpack.c.l.b16 %v544
      %v613 = vunpack.c.l.b16 %v545
      %v614 = vunpack.c.l.b16 %v546
      %v615 = vunpack.c.l.b16 %v547
      %v616 = vunpack.c.l.b16 %v548
      %v617 = vunpack.c.l.b16 %v549
      %v618 = vunpack.c.l.b16 %v550
      %v619 = vunpack.c.l.b16 %v551
      %v620 = vunpack.c.l.b16 %v552
      %v621 = vunpack.c.l.b16 %v553
      %v622 = vpack.c.b16 %v607, %v606
      %v623 = vpack.c.b16 %v609, %v608
      %v624 = vpack.c.b16 %v611, %v610
      %v625 = vpack.c.b16 %v613, %v612
      %v626 = vpack.c.b16 %v615, %v614
      %v627 = vpack.c.b16 %v617, %v616
      %v628 = vpack.c.b16 %v619, %v618
      %v629 = vpack.c.b16 %v621, %v620
      %638 = vmatprep.subr.bf16.mxu0 0
      %639 = vmatpush1.bf16.msra.mxu0 %v622
      %640 = vmatprep.subr.bf16.mxu0 0
      %641 = vmatpush1.bf16.msra.mxu0 %v623
      %642 = vmatprep.subr.bf16.mxu0 0
      %643 = vmatpush1.bf16.msra.mxu0 %v624
      %644 = vmatprep.subr.bf16.mxu0 0
      %645 = vmatpush1.bf16.msra.mxu0 %v625
      %646 = vmatprep.subr.bf16.mxu0 0
      %647 = vmatpush1.bf16.msra.mxu0 %v626
      %648 = vmatprep.subr.bf16.mxu0 0
      %649 = vmatpush1.bf16.msra.mxu0 %v627
      %650 = vmatprep.subr.bf16.mxu0 0
      %651 = vmatpush1.bf16.msra.mxu0 %v628
      %652 = vmatprep.subr.bf16.mxu0 0
      %653 = vmatpush1.bf16.msra.mxu0 %v629
      %654 = vmatprep.subr.bf16.mxu0 0
      %655 = vmatpush1.bf16.msra.mxu0 0
      %656 = vmatprep.subr.bf16.mxu0 0
      %657 = vmatpush1.bf16.msra.mxu0 0
      %658 = vmatprep.subr.bf16.mxu0 0
      %659 = vmatpush1.bf16.msra.mxu0 0
      %660 = vmatprep.subr.bf16.mxu0 0
      %661 = vmatpush1.bf16.msra.mxu0 0
      %662 = vmatprep.subr.bf16.mxu0 0
      %663 = vmatpush1.bf16.msra.mxu0 0
      %664 = vmatprep.subr.bf16.mxu0 0
      %665 = vmatpush1.bf16.msra.mxu0 0
      %666 = vmatprep.subr.bf16.mxu0 0
      %667 = vmatpush1.bf16.msra.mxu0 0
      %668 = vmatprep.subr.bf16.mxu0 0
      %669 = vmatpush1.bf16.msra.mxu0 0
      %670 = vmatprep.mubr.bf16.mxu0 0
      %671 = vmatmul.mubr.bf16.gmra.mrb[0].mxu0 %v578
      %v672 = vpop.f32.mrb[0].mxu0
      %v673 = vadd.f32 %v218, %v672
      %v674 = vpop.f32.mrb[0].mxu0
      %v675 = vpop.f32.mrb[0].mxu0
      %v676 = vadd.f32 %v218, %v675
      %v677 = vpop.f32.mrb[0].mxu0
      %678 = vmatprep.mubr.bf16.mxu0 0
      %679 = vmatmul.mubr.bf16.gmra.mrb[0].mxu0 %v579
      %v680 = vpop.f32.mrb[0].mxu0
      %v681 = vadd.f32 %v218, %v680
      %v682 = vpop.f32.mrb[0].mxu0
      %v683 = vpop.f32.mrb[0].mxu0
      %v684 = vadd.f32 %v218, %v683
      %v685 = vpop.f32.mrb[0].mxu0
      %686 = vmatprep.mubr.bf16.mxu0 0
      %687 = vmatmul.mubr.bf16.gmra.mrb[0].mxu0 %v580
      %v688 = vpop.f32.mrb[0].mxu0
      %v689 = vadd.f32 %v218, %v688
      %v690 = vpop.f32.mrb[0].mxu0
      %v691 = vpop.f32.mrb[0].mxu0
      %v692 = vadd.f32 %v218, %v691
      %v693 = vpop.f32.mrb[0].mxu0
      %694 = vmatprep.mubr.bf16.mxu0 0
      %695 = vmatmul.mubr.bf16.gmra.mrb[0].mxu0 %v581
      %v696 = vpop.f32.mrb[0].mxu0
      %v697 = vadd.f32 %v218, %v696
      %v698 = vpop.f32.mrb[0].mxu0
      %v699 = vpop.f32.mrb[0].mxu0
      %v700 = vadd.f32 %v218, %v699
      %v701 = vpop.f32.mrb[0].mxu0
      %702 = vmatprep.mubr.bf16.mxu0 0
      %703 = vmatmul.mubr.bf16.gmra.mrb[0].mxu0 %v582
      %v704 = vpop.f32.mrb[0].mxu0
      %v705 = vadd.f32 %v218, %v704
      %v706 = vpop.f32.mrb[0].mxu0
      %v707 = vpop.f32.mrb[0].mxu0
      %v708 = vadd.f32 %v218, %v707
      %v709 = vpop.f32.mrb[0].mxu0
      %710 = vmatprep.mubr.bf16.mxu0 0
      %711 = vmatmul.mubr.bf16.gmra.mrb[0].mxu0 %v583
      %v712 = vpop.f32.mrb[0].mxu0
      %v713 = vadd.f32 %v218, %v712
      %v714 = vpop.f32.mrb[0].mxu0
      %v715 = vpop.f32.mrb[0].mxu0
      %v716 = vadd.f32 %v218, %v715
      %v717 = vpop.f32.mrb[0].mxu0
      %718 = vdwg.mxu0
      %v719 = vmax.f32 %v673, 0.0
      %v720 = vmax.f32 %v676, 0.0
      %v721 = vmax.f32 %v681, 0.0
      %v722 = vmax.f32 %v684, 0.0
      %v723 = vmax.f32 %v689, 0.0
      %v724 = vmax.f32 %v692, 0.0
      %v725 = vmax.f32 %v697, 0.0
      %v726 = vmax.f32 %v700, 0.0
      %v727 = vmax.f32 %v705, 0.0
      %v728 = vmax.f32 %v708, 0.0
      %v729 = vmax.f32 %v713, 0.0
      %v730 = vmax.f32 %v716, 0.0
      %v731 = vmul.f32 %v719, %v180
      %v732 = vmul.f32 %v720, %v181
      %v733 = vmul.f32 %v721, %v180
      %v734 = vmul.f32 %v722, %v181
      %v735 = vmul.f32 %v723, %v180
      %v736 = vmul.f32 %v724, %v181
      %v737 = vmul.f32 %v725, %v180
      %v738 = vmul.f32 %v726, %v181
      %v739 = vmul.f32 %v727, %v180
      %v740 = vmul.f32 %v728, %v181
      %v741 = vmul.f32 %v729, %v180
      %v742 = vmul.f32 %v730, %v181
      %v743 = vpack.c.bf16 %v732, %v731
      %v744 = vpack.c.bf16 %v734, %v733
      %v745 = vpack.c.bf16 %v736, %v735
      %v746 = vpack.c.bf16 %v738, %v737
      %v747 = vpack.c.bf16 %v740, %v739
      %v748 = vpack.c.bf16 %v742, %v741
      %v755 = vunpack.c.l.b16 %v743
      %v756 = vunpack.c.h.b16 %v743
      %v757 = vunpack.c.l.b16 %v744
      %v758 = vunpack.c.h.b16 %v744
      %v759 = vunpack.c.l.b16 %v745
      %v760 = vunpack.c.h.b16 %v745
      %v761 = vunpack.c.l.b16 %v746
      %v762 = vunpack.c.h.b16 %v746
      %v763 = vunpack.c.l.b16 %v747
      %v764 = vunpack.c.h.b16 %v747
      %v765 = vunpack.c.l.b16 %v748
      %v766 = vunpack.c.h.b16 %v748
      %v767 = vpack.c.b16 %v755, %v755
      %v768 = vpack.c.b16 %v756, %v756
      %v769 = vpack.c.b16 %v757, %v757
      %v770 = vpack.c.b16 %v758, %v758
      %v771 = vpack.c.b16 %v759, %v759
      %v772 = vpack.c.b16 %v760, %v760
      %v773 = vpack.c.b16 %v761, %v761
      %v774 = vpack.c.b16 %v762, %v762
      %v775 = vpack.c.b16 %v763, %v763
      %v776 = vpack.c.b16 %v764, %v764
      %v777 = vpack.c.b16 %v765, %v765
      %v778 = vpack.c.b16 %v766, %v766
      %s791 = scalar_lea.vmem %s170, 64
      %792 = vst [vmem:[%s791] sm:$0xf] %v767
      %793 = vst [vmem:[%s791 + $0x4] sm:$0xf] %v768
      %794 = vst [vmem:[%s791 + $0x8] sm:$0xf] %v769
      %795 = vst [vmem:[%s791 + $0xc] sm:$0xf] %v770
      %796 = vst [vmem:[%s791 + $0x10] sm:$0xf] %v771
      %797 = vst [vmem:[%s791 + $0x14] sm:$0xf] %v772
      %798 = vst [vmem:[%s791 + $0x18] sm:$0xf] %v773
      %799 = vst [vmem:[%s791 + $0x1c] sm:$0xf] %v774
      %800 = vst [vmem:[%s791 + $0x20] sm:$0xf] %v775
      %801 = vst [vmem:[%s791 + $0x24] sm:$0xf] %v776
      %802 = vst [vmem:[%s791 + $0x28] sm:$0xf] %v777
      %803 = vst [vmem:[%s791 + $0x2c] sm:$0xf] %v778
      %p804 = scmp.lt.s32.totalorder %s14, 1
      %s805 = scalar_select %p804, %s14, 1
      %s806 = smul.addr %s805, 28
      %s807 = smul.addr %s806, 4
      %s808 = scalar_lea.vmem %s3, %s807
      // Predicated region
      $region33: #{conv2d_model_forward.2} parent=31 // pred_check
        %p809 = pneg %p100
      $region34: #{conv2d_model_forward.2} parent=31 // pred_check_branch
        %811 = sbr.rel (%p809) target = $region36
      $region35: #{conv2d_model_forward.2} parent=31 // pred_region
        _
      $region36: #{conv2d_model_forward.2} parent=31 // pred_fallthru
        _
    $region32: #{conv2d_model_forward.2} parent=5 // pred_fallthru
      _
    %p812 = scmp.le.s32.totalorder 2, %s9
    // Predicated region
    $region37: #{conv2d_model_forward.2} parent=5 // pred_check
      %p813 = pneg %p812
    $region38: #{conv2d_model_forward.2} parent=5 // pred_check_branch
      %815 = sbr.rel (%p813) target = $region40
    $region39: #{conv2d_model_forward.2} parent=5 // pred_region
      %s816 = ssub.s32 %s9, 2
      // Predicated region
      $region41: #{conv2d_model_forward.2} parent=39 // pred_check
        %p817 = pneg %p106
      $region42: #{conv2d_model_forward.2} parent=39 // pred_check_branch
        %819 = sbr.rel (%p817) target = $region44
      $region43: #{conv2d_model_forward.2} parent=39 // pred_region
        %p820 = scmp.lt.s32.totalorder %s15, 1
        %s821 = scalar_select %p820, %s15, 1
        %s822 = smul.addr %s821, 28
        %s823 = smul.addr %s822, 4
        %s824 = scalar_lea.vmem %s3, %s823
      $region44: #{conv2d_model_forward.2} parent=39 // pred_fallthru
        _
    $region40: #{conv2d_model_forward.2} parent=5 // pred_fallthru
      _
  $region6: #{conv2d_model_forward.2} parent=0 // loop_footer
    %s13 = sadd.s32 1, %s9
  $region7: #{conv2d_model_forward.2} parent=0 // loop_footer_branch
    %8 = sbr.rel target = $region3
  $region8: #{conv2d_model_forward.2} parent=0 // loop_exit
    _

// kernel: conv2d_model_forward.3
$region0: #{conv2d_model_forward.3}
  #allocation0 [shape = 'u32[]', space=smem, size = 0x4, offset = 0x4, fixed_abs, tag = 'smem constant byte address 0x4 - core index']
  #allocation1 [shape = 'u32[144,128]{1,0:T(1,128)}', space=vmem, size = 0x12000, scoped, tag = 'internal scratch']
  %s0 = inlined_call_operand.vmem [shape: bf16[2,14,16,128], index: 0, kind: input, shape index: {}]
  %s1 = inlined_call_operand.vmem [shape: bf16[3,128,128], index: 1, kind: input, shape index: {}]
  %s2 = inlined_call_operand.vmem [shape: f32[1,128], index: 2, kind: input, shape index: {}]
  %s3 = inlined_call_operand.vmem [shape: bf16[2,12,16,128], index: 3, kind: output, shape index: {}]
  %s4 = sld [smem:[#allocation0]]
  $region45: #{conv2d_model_forward.3} parent=0
    _
  %s6 = ssub.s32 1, %s4
  %s7 = scalar_select 0, %s6, %s4
  loop: start=0, step=1, limit=4
  $region2: #{conv2d_model_forward.3} parent=0 // loop_pre_header
    _
  $region3: #{conv2d_model_forward.3} parent=0 // loop_header
    %s9 = sphi 0, %s13
    %p10 = scmp.ge.s32.totalorder %s9, 4
    %s19 = sphi 0, %s21
    %s22 = sphi 0, %s19
    %s23 = sphi 0, %s22
    %s39 = sphi 0, %s23
    %s43 = sphi 0, %s43
    %s45 = sphi 0, %s43
    %s46 = sphi 0, %s45
    %s60 = sphi 0, %s46
    %s64 = sphi 0, %s64
    %s66 = sphi 0, %s64
    %s67 = sphi 0, %s66
    %s81 = sphi 0, %s67
    %s87 = sphi 0, %s89
    %s90 = sphi 0, %s87
    %s91 = sphi 0, %s90
    %s107 = sphi 0, %s91
  $region4: #{conv2d_model_forward.3} parent=0 // loop_header_branch
    %12 = sbr.rel (%p10) target = $region8
  $region5: #{conv2d_model_forward.3} parent=0 // loop_body
    %s14 = ssub.s32 %s9, 1
    %s15 = ssub.s32 %s9, 2
    %s16 = sadd.s32 %s9, 1
    %s17 = ssub.s32 %s9, %s16
    %p18 = scmp.eq.s32.totalorder %s17, 0
    %s20 = sadd.s32 %s19, 1
    %s21 = scalar_select %p18, %s19, %s20
    %p24 = pneg %p18
    %p25 = scmp.eq.s32.totalorder %s9, 1
    %p26 = por %p24, %p25
    %p27 = scmp.ne.s32.totalorder %s19, %s22
    %p28 = scmp.eq.s32.totalorder %s9, 0
    %p29 = por %p27, %p28
    %p30 = scmp.ne.s32.totalorder %s19, %s22
    %p31 = scmp.eq.s32.totalorder %s14, 1
    %p32 = por %p30, %p31
    %p33 = scmp.ne.s32.totalorder %s22, %s23
    %p34 = scmp.eq.s32.totalorder %s14, 0
    %p35 = por %p33, %p34
    %p36 = scmp.ne.s32.totalorder %s22, %s23
    %p37 = scmp.eq.s32.totalorder %s15, 1
    %p38 = por %p36, %p37
    %p40 = scmp.ne.s32.totalorder %s23, %s39
    %p41 = scmp.eq.s32.totalorder %s15, 0
    %p42 = por %p40, %p41
    %s44 = sadd.s32 %s43, 1
    %p47 = scmp.eq.s32.totalorder %s9, 1
    %p48 = scmp.ne.s32.totalorder %s43, %s45
    %p49 = scmp.eq.s32.totalorder %s9, 0
    %p50 = por %p48, %p49
    %p51 = scmp.ne.s32.totalorder %s43, %s45
    %p52 = scmp.eq.s32.totalorder %s14, 1
    %p53 = por %p51, %p52
    %p54 = scmp.ne.s32.totalorder %s45, %s46
    %p55 = scmp.eq.s32.totalorder %s14, 0
    %p56 = por %p54, %p55
    %p57 = scmp.ne.s32.totalorder %s45, %s46
    %p58 = scmp.eq.s32.totalorder %s15, 1
    %p59 = por %p57, %p58
    %p61 = scmp.ne.s32.totalorder %s46, %s60
    %p62 = scmp.eq.s32.totalorder %s15, 0
    %p63 = por %p61, %p62
    %s65 = sadd.s32 %s64, 1
    %p68 = scmp.eq.s32.totalorder %s9, 1
    %p69 = scmp.ne.s32.totalorder %s64, %s66
    %p70 = scmp.eq.s32.totalorder %s9, 0
    %p71 = por %p69, %p70
    %p72 = scmp.ne.s32.totalorder %s64, %s66
    %p73 = scmp.eq.s32.totalorder %s14, 1
    %p74 = por %p72, %p73
    %p75 = scmp.ne.s32.totalorder %s66, %s67
    %p76 = scmp.eq.s32.totalorder %s14, 0
    %p77 = por %p75, %p76
    %p78 = scmp.ne.s32.totalorder %s66, %s67
    %p79 = scmp.eq.s32.totalorder %s15, 1
    %p80 = por %p78, %p79
    %p82 = scmp.ne.s32.totalorder %s67, %s81
    %p83 = scmp.eq.s32.totalorder %s15, 0
    %p84 = por %p82, %p83
    %s85 = ssub.s32 %s9, %s16
    %p86 = scmp.eq.s32.totalorder %s85, 0
    %s88 = sadd.s32 %s87, 1
    %s89 = scalar_select %p86, %s87, %s88
    %p92 = pneg %p86
    %p93 = scmp.eq.s32.totalorder %s9, 1
    %p94 = por %p92, %p93
    %p95 = scmp.ne.s32.totalorder %s87, %s90
    %p96 = scmp.eq.s32.totalorder %s9, 0
    %p97 = por %p95, %p96
    %p98 = scmp.ne.s32.totalorder %s87, %s90
    %p99 = scmp.eq.s32.totalorder %s14, 1
    %p100 = por %p98, %p99
    %p101 = scmp.ne.s32.totalorder %s90, %s91
    %p102 = scmp.eq.s32.totalorder %s14, 0
    %p103 = por %p101, %p102
    %p104 = scmp.ne.s32.totalorder %s90, %s91
    %p105 = scmp.eq.s32.totalorder %s15, 1
    %p106 = por %p104, %p105
    %p108 = scmp.ne.s32.totalorder %s91, %s107
    %p109 = scmp.eq.s32.totalorder %s15, 0
    %p110 = por %p108, %p109
    %p111 = scmp.le.s32.totalorder 1, %s9
    %p112 = scmp.lt.s32.totalorder %s9, 3
    %p113 = pnand %p111, %p112
    %p114 = pneg %p113
    // Predicated region
    $region9: #{conv2d_model_forward.3} parent=5 // pred_check
      _
    $region10: #{conv2d_model_forward.3} parent=5 // pred_check_branch
      %116 = sbr.rel (%p113) target = $region12
    $region11: #{conv2d_model_forward.3} parent=5 // pred_region
      %s117 = ssub.s32 %s9, 1
      // Predicated region
      $region13: #{conv2d_model_forward.3} parent=11 // pred_check
        %p118 = pneg %p56
      $region14: #{conv2d_model_forward.3} parent=11 // pred_check_branch
        %120 = sbr.rel (%p118) target = $region16
      $region15: #{conv2d_model_forward.3} parent=11 // pred_region
        _
      $region16: #{conv2d_model_forward.3} parent=11 // pred_fallthru
        _
      // Predicated region
      $region17: #{conv2d_model_forward.3} parent=11 // pred_check
        %p121 = pneg %p77
      $region18: #{conv2d_model_forward.3} parent=11 // pred_check_branch
        %123 = sbr.rel (%p121) target = $region20
      $region19: #{conv2d_model_forward.3} parent=11 // pred_region
        _
      $region20: #{conv2d_model_forward.3} parent=11 // pred_fallthru
        _
    $region12: #{conv2d_model_forward.3} parent=5 // pred_fallthru
      _
    %p124 = scmp.lt.s32.totalorder %s9, 2
    // Predicated region
    $region21: #{conv2d_model_forward.3} parent=5 // pred_check
      %p125 = pneg %p124
    $region22: #{conv2d_model_forward.3} parent=5 // pred_check_branch
      %127 = sbr.rel (%p125) target = $region24
    $region23: #{conv2d_model_forward.3} parent=5 // pred_region
      // Predicated region
      $region25: #{conv2d_model_forward.3} parent=23 // pred_check
        %p128 = pneg %p29
      $region26: #{conv2d_model_forward.3} parent=23 // pred_check_branch
        %130 = sbr.rel (%p128) target = $region28
      $region27: #{conv2d_model_forward.3} parent=23 // pred_region
        %p131 = scmp.lt.s32.totalorder %s9, 1
        %s132 = scalar_select %p131, %s9, 1
        %s133 = smul.addr %s132, 28
        %s134 = smul.addr %s133, 4
        %s135 = scalar_lea.vmem %s0, %s134
      $region28: #{conv2d_model_forward.3} parent=23 // pred_fallthru
        _
    $region24: #{conv2d_model_forward.3} parent=5 // pred_fallthru
      _
    %p136 = scmp.le.s32.totalorder 1, %s9
    %p137 = scmp.lt.s32.totalorder %s9, 3
    %p138 = pnand %p136, %p137
    %p139 = pneg %p138
    // Predicated region
    $region29: #{conv2d_model_forward.3} parent=5 // pred_check
      _
    $region30: #{conv2d_model_forward.3} parent=5 // pred_check_branch
      %141 = sbr.rel (%p138) target = $region32
    $region31: #{conv2d_model_forward.3} parent=5 // pred_region
      %s142 = ssub.s32 %s9, 1
      %p143 = scmp.lt.s32.totalorder %s14, 1
      %s144 = scalar_select %p143, %s14, 1
      %s145 = smul.addr %s144, 28
      %s146 = smul.addr %s145, 4
      %s147 = scalar_lea.vmem %s0, %s146
      %p148 = pneg %p35
      %p149 = pneg %p32
      %p150 = pneg %p56
      %p151 = pneg %p53
      %p152 = pneg %p77
      %p153 = pneg %p74
      %p154 = pneg %p103
      %p155 = pneg %p100
      %p156 = scmp.lt.s32.totalorder %s14, 1
      %s157 = scalar_select %p156, %s14, 1
      %s158 = smul.addr %s157, 24
      %s159 = smul.addr %s158, 4
      %s160 = scalar_lea.vmem %s3, %s159
      %p161 = scmp.lt.s32.totalorder %s14, 1
      %s162 = scalar_select %p161, %s14, 1
      %s163 = smul.addr %s162, 28
      %s164 = smul.addr %s163, 4
      %s165 = scalar_lea.vmem %s0, %s164
      %p166 = scmp.lt.s32.totalorder %s14, 1
      %s167 = scalar_select %p166, %s14, 1
      %s168 = smul.addr %s167, 24
      %s169 = smul.addr %s168, 4
      %s170 = scalar_lea.vmem %s3, %s169
      %v172 = vld [vmem:[%s2] sm:$0x1]
      %v173 = vlaneseq
      %v174 = vshrl.u32 %v173, 7
      %v175 = vadd.s32 %v174, 8
      %vm176 = vcmp.lt.s32.totalorder %v174, 12
      %vm177 = vcmp.lt.s32.totalorder %v175, 12
      %v178 = vsel %vm176, 1, 0
      %v179 = vsel %vm177, 1, 0
      %v180 = vcvt.s32.f32 %v178
      %v181 = vcvt.s32.f32 %v179
      %v182 = vld [vmem:[%s165] sm:$0xf]
      %v183 = vld [vmem:[%s165 + $0x4] sm:$0xf]
      %v184 = vld [vmem:[%s165 + $0x8] sm:$0xf]
      %v185 = vld [vmem:[%s165 + $0xc] sm:$0xf]
      %v186 = vld [vmem:[%s165 + $0x10] sm:$0xf]
      %v187 = vld [vmem:[%s165 + $0x14] sm:$0xf]
      %v188 = vld [vmem:[%s165 + $0x18] sm:$0xf]
      %v189 = vld [vmem:[%s165 + $0x1c] sm:$0xf]
      %v190 = vld [vmem:[%s165 + $0x20] sm:$0xf]
      %v191 = vld [vmem:[%s165 + $0x24] sm:$0xf]
      %v192 = vld [vmem:[%s165 + $0x28] sm:$0xf]
      %v193 = vld [vmem:[%s165 + $0x2c] sm:$0xf]
      %v194 = vld [vmem:[%s165 + $0x30] sm:$0xf]
      %v195 = vld [vmem:[%s165 + $0x34] sm:$0xf]
      %v196 = vld [vmem:[%s165 + $0x38] sm:$0xf]
      %v197 = vld [vmem:[%s165 + $0x3c] sm:$0xf]
      %v198 = vld [vmem:[%s1] sm:$0xf]
      %v199 = vld [vmem:[%s1 + $0x4] sm:$0xf]
      %v200 = vld [vmem:[%s1 + $0x8] sm:$0xf]
      %v201 = vld [vmem:[%s1 + $0xc] sm:$0xf]
      %v202 = vld [vmem:[%s1 + $0x10] sm:$0xf]
      %v203 = vld [vmem:[%s1 + $0x14] sm:$0xf]
      %v204 = vld [vmem:[%s1 + $0x18] sm:$0xf]
      %v205 = vld [vmem:[%s1 + $0x1c] sm:$0xf]
      %v206 = vld [vmem:[%s1 + $0x20] sm:$0xf]
      %v207 = vld [vmem:[%s1 + $0x24] sm:$0xf]
      %v208 = vld [vmem:[%s1 + $0x28] sm:$0xf]
      %v209 = vld [vmem:[%s1 + $0x2c] sm:$0xf]
      %v210 = vld [vmem:[%s1 + $0x30] sm:$0xf]
      %v211 = vld [vmem:[%s1 + $0x34] sm:$0xf]
      %v212 = vld [vmem:[%s1 + $0x38] sm:$0xf]
      %v213 = vld [vmem:[%s1 + $0x3c] sm:$0xf]
      %s214 = scalar_lea.vmem %s165, 8
      %v215 = vld [vmem:[%s214] sm:$0xf]
      %v216 = vld [vmem:[%s214 + $0x4] sm:$0xf]
      %v217 = vld [vmem:[%s214 + $0x8] sm:$0xf]
      %v218 = vld [vmem:[%s214 + $0xc] sm:$0xf]
      %v219 = vld [vmem:[%s214 + $0x10] sm:$0xf]
      %v220 = vld [vmem:[%s214 + $0x14] sm:$0xf]
      %v221 = vld [vmem:[%s214 + $0x18] sm:$0xf]
      %v222 = vld [vmem:[%s214 + $0x1c] sm:$0xf]
      %v223 = vld [vmem:[%s214 + $0x20] sm:$0xf]
      %v224 = vld [vmem:[%s214 + $0x24] sm:$0xf]
      %v225 = vld [vmem:[%s214 + $0x28] sm:$0xf]
      %v226 = vld [vmem:[%s214 + $0x2c] sm:$0xf]
      %v227 = vld [vmem:[%s214 + $0x30] sm:$0xf]
      %v228 = vld [vmem:[%s214 + $0x34] sm:$0xf]
      %v229 = vld [vmem:[%s214 + $0x38] sm:$0xf]
      %v230 = vld [vmem:[%s214 + $0x3c] sm:$0xf]
      %s231 = scalar_lea.vmem %s1, 64
      %v232 = vld [vmem:[%s231] sm:$0xf]
      %v233 = vld [vmem:[%s231 + $0x4] sm:$0xf]
      %v234 = vld [vmem:[%s231 + $0x8] sm:$0xf]
      %v235 = vld [vmem:[%s231 + $0xc] sm:$0xf]
      %v236 = vld [vmem:[%s231 + $0x10] sm:$0xf]
      %v237 = vld [vmem:[%s231 + $0x14] sm:$0xf]
      %v238 = vld [vmem:[%s231 + $0x18] sm:$0xf]
      %v239 = vld [vmem:[%s231 + $0x1c] sm:$0xf]
      %v240 = vld [vmem:[%s231 + $0x20] sm:$0xf]
      %v241 = vld [vmem:[%s231 + $0x24] sm:$0xf]
      %v242 = vld [vmem:[%s231 + $0x28] sm:$0xf]
      %v243 = vld [vmem:[%s231 + $0x2c] sm:$0xf]
      %v244 = vld [vmem:[%s231 + $0x30] sm:$0xf]
      %v245 = vld [vmem:[%s231 + $0x34] sm:$0xf]
      %v246 = vld [vmem:[%s231 + $0x38] sm:$0xf]
      %v247 = vld [vmem:[%s231 + $0x3c] sm:$0xf]
      %v264 = vunpack.c.l.b16 %v215
      %v265 = vunpack.c.l.b16 %v216
      %v266 = vunpack.c.l.b16 %v217
      %v267 = vunpack.c.l.b16 %v218
      %v268 = vunpack.c.l.b16 %v219
      %v269 = vunpack.c.l.b16 %v220
      %v270 = vunpack.c.l.b16 %v221
      %v271 = vunpack.c.l.b16 %v222
      %v272 = vunpack.c.l.b16 %v223
      %v273 = vunpack.c.l.b16 %v224
      %v274 = vunpack.c.l.b16 %v225
      %v275 = vunpack.c.l.b16 %v226
      %v276 = vunpack.c.l.b16 %v227
      %v277 = vunpack.c.l.b16 %v228
      %v278 = vunpack.c.l.b16 %v229
      %v279 = vunpack.c.l.b16 %v230
      %v280 = vpack.c.b16 %v265, %v264
      %v281 = vpack.c.b16 %v267, %v266
      %v282 = vpack.c.b16 %v269, %v268
      %v283 = vpack.c.b16 %v271, %v270
      %v284 = vpack.c.b16 %v273, %v272
      %v285 = vpack.c.b16 %v275, %v274
      %v286 = vpack.c.b16 %v277, %v276
      %v287 = vpack.c.b16 %v279, %v278
      %v312 = vunpack.c.l.b16 %v232
      %v313 = vunpack.c.l.b16 %v233
      %v314 = vunpack.c.l.b16 %v234
      %v315 = vunpack.c.l.b16 %v235
      %v316 = vunpack.c.l.b16 %v236
      %v317 = vunpack.c.l.b16 %v237
      %v318 = vunpack.c.l.b16 %v238
      %v319 = vunpack.c.l.b16 %v239
      %v320 = vunpack.c.l.b16 %v240
      %v321 = vunpack.c.l.b16 %v241
      %v322 = vunpack.c.l.b16 %v242
      %v323 = vunpack.c.l.b16 %v243
      %v324 = vunpack.c.l.b16 %v244
      %v325 = vunpack.c.l.b16 %v245
      %v326 = vunpack.c.l.b16 %v246
      %v327 = vunpack.c.l.b16 %v247
      %v328 = vpack.c.b16 %v313, %v312
      %v329 = vpack.c.b16 %v315, %v314
      %v330 = vpack.c.b16 %v317, %v316
      %v331 = vpack.c.b16 %v319, %v318
      %v332 = vpack.c.b16 %v321, %v320
      %v333 = vpack.c.b16 %v323, %v322
      %v334 = vpack.c.b16 %v325, %v324
      %v335 = vpack.c.b16 %v327, %v326
      %344 = vmatprep.subr.bf16.mxu0 0
      %345 = vmatpush1.bf16.msra.mxu0 %v328
      %346 = vmatprep.subr.bf16.mxu0 0
      %347 = vmatpush1.bf16.msra.mxu0 %v329
      %348 = vmatprep.subr.bf16.mxu0 0
      %349 = vmatpush1.bf16.msra.mxu0 %v330
      %350 = vmatprep.subr.bf16.mxu0 0
      %351 = vmatpush1.bf16.msra.mxu0 %v331
      %352 = vmatprep.subr.bf16.mxu0 0
      %353 = vmatpush1.bf16.msra.mxu0 %v332
      %354 = vmatprep.subr.bf16.mxu0 0
      %355 = vmatpush1.bf16.msra.mxu0 %v333
      %356 = vmatprep.subr.bf16.mxu0 0
      %357 = vmatpush1.bf16.msra.mxu0 %v334
      %358 = vmatprep.subr.bf16.mxu0 0
      %359 = vmatpush1.bf16.msra.mxu0 %v335
      %360 = vmatprep.subr.bf16.mxu0 0
      %361 = vmatpush1.bf16.msra.mxu0 0
      %362 = vmatprep.subr.bf16.mxu0 0
      %363 = vmatpush1.bf16.msra.mxu0 0
      %364 = vmatprep.subr.bf16.mxu0 0
      %365 = vmatpush1.bf16.msra.mxu0 0
      %366 = vmatprep.subr.bf16.mxu0 0
      %367 = vmatpush1.bf16.msra.mxu0 0
      %368 = vmatprep.subr.bf16.mxu0 0
      %369 = vmatpush1.bf16.msra.mxu0 0
      %370 = vmatprep.subr.bf16.mxu0 0
      %371 = vmatpush1.bf16.msra.mxu0 0
      %372 = vmatprep.subr.bf16.mxu0 0
      %373 = vmatpush1.bf16.msra.mxu0 0
      %374 = vmatprep.subr.bf16.mxu0 0
      %375 = vmatpush1.bf16.msra.mxu0 0
      %376 = vmatprep.mubr.bf16.mxu0 0
      %377 = vmatmul.mubr.bf16.gmra.mrb[0].mxu0 %v280
      %v378 = vpop.f32.mrb[0].mxu0
      %v379 = vadd.f32 0.0, %v378
      %v380 = vpop.f32.mrb[0].mxu0
      %v381 = vpop.f32.mrb[0].mxu0
      %v382 = vadd.f32 0.0, %v381
      %v383 = vpop.f32.mrb[0].mxu0
      %384 = vmatprep.mubr.bf16.mxu0 0
      %385 = vmatmul.mubr.bf16.gmra.mrb[0].mxu0 %v281
      %v386 = vpop.f32.mrb[0].mxu0
      %v387 = vadd.f32 0.0, %v386
      %v388 = vpop.f32.mrb[0].mxu0
      %v389 = vpop.f32.mrb[0].mxu0
      %v390 = vadd.f32 0.0, %v389
      %v391 = vpop.f32.mrb[0].mxu0
      %392 = vmatprep.mubr.bf16.mxu0 0
      %393 = vmatmul.mubr.bf16.gmra.mrb[0].mxu0 %v282
      %v394 = vpop.f32.mrb[0].mxu0
      %v395 = vadd.f32 0.0, %v394
      %v396 = vpop.f32.mrb[0].mxu0
      %v397 = vpop.f32.mrb[0].mxu0
      %v398 = vadd.f32 0.0, %v397
      %v399 = vpop.f32.mrb[0].mxu0
      %400 = vmatprep.mubr.bf16.mxu0 0
      %401 = vmatmul.mubr.bf16.gmra.mrb[0].mxu0 %v283
      %v402 = vpop.f32.mrb[0].mxu0
      %v403 = vadd.f32 0.0, %v402
      %v404 = vpop.f32.mrb[0].mxu0
      %v405 = vpop.f32.mrb[0].mxu0
      %v406 = vadd.f32 0.0, %v405
      %v407 = vpop.f32.mrb[0].mxu0
      %408 = vmatprep.mubr.bf16.mxu0 0
      %409 = vmatmul.mubr.bf16.gmra.mrb[0].mxu0 %v284
      %v410 = vpop.f32.mrb[0].mxu0
      %v411 = vadd.f32 0.0, %v410
      %v412 = vpop.f32.mrb[0].mxu0
      %v413 = vpop.f32.mrb[0].mxu0
      %v414 = vadd.f32 0.0, %v413
      %v415 = vpop.f32.mrb[0].mxu0
      %416 = vmatprep.mubr.bf16.mxu0 0
      %417 = vmatmul.mubr.bf16.gmra.mrb[0].mxu0 %v285
      %v418 = vpop.f32.mrb[0].mxu0
      %v419 = vadd.f32 0.0, %v418
      %v420 = vpop.f32.mrb[0].mxu0
      %v421 = vpop.f32.mrb[0].mxu0
      %v422 = vadd.f32 0.0, %v421
      %v423 = vpop.f32.mrb[0].mxu0
      %424 = vmatprep.mubr.bf16.mxu0 0
      %425 = vmatmul.mubr.bf16.gmra.mrb[0].mxu0 %v286
      %v426 = vpop.f32.mrb[0].mxu0
      %v427 = vadd.f32 0.0, %v426
      %v428 = vpop.f32.mrb[0].mxu0
      %v429 = vpop.f32.mrb[0].mxu0
      %v430 = vadd.f32 0.0, %v429
      %v431 = vpop.f32.mrb[0].mxu0
      %432 = vmatprep.mubr.bf16.mxu0 0
      %433 = vmatmul.mubr.bf16.gmra.mrb[0].mxu0 %v287
      %v434 = vpop.f32.mrb[0].mxu0
      %v435 = vadd.f32 0.0, %v434
      %v436 = vpop.f32.mrb[0].mxu0
      %v437 = vpop.f32.mrb[0].mxu0
      %v438 = vadd.f32 0.0, %v437
      %v439 = vpop.f32.mrb[0].mxu0
      %440 = vdwg.mxu0
      %v457 = vunpack.c.l.b16 %v182
      %v458 = vunpack.c.l.b16 %v183
      %v459 = vunpack.c.l.b16 %v184
      %v460 = vunpack.c.l.b16 %v185
      %v461 = vunpack.c.l.b16 %v186
      %v462 = vunpack.c.l.b16 %v187
      %v463 = vunpack.c.l.b16 %v188
      %v464 = vunpack.c.l.b16 %v189
      %v465 = vunpack.c.l.b16 %v190
      %v466 = vunpack.c.l.b16 %v191
      %v467 = vunpack.c.l.b16 %v192
      %v468 = vunpack.c.l.b16 %v193
      %v469 = vunpack.c.l.b16 %v194
      %v470 = vunpack.c.l.b16 %v195
      %v471 = vunpack.c.l.b16 %v196
      %v472 = vunpack.c.l.b16 %v197
      %v473 = vpack.c.b16 %v458, %v457
      %v474 = vpack.c.b16 %v460, %v459
      %v475 = vpack.c.b16 %v462, %v461
      %v476 = vpack.c.b16 %v464, %v463
      %v477 = vpack.c.b16 %v466, %v465
      %v478 = vpack.c.b16 %v468, %v467
      %v479 = vpack.c.b16 %v470, %v469
      %v480 = vpack.c.b16 %v472, %v471
      %v505 = vunpack.c.l.b16 %v198
      %v506 = vunpack.c.l.b16 %v199
      %v507 = vunpack.c.l.b16 %v200
      %v508 = vunpack.c.l.b16 %v201
      %v509 = vunpack.c.l.b16 %v202
      %v510 = vunpack.c.l.b16 %v203
      %v511 = vunpack.c.l.b16 %v204
      %v512 = vunpack.c.l.b16 %v205
      %v513 = vunpack.c.l.b16 %v206
      %v514 = vunpack.c.l.b16 %v207
      %v515 = vunpack.c.l.b16 %v208
      %v516 = vunpack.c.l.b16 %v209
      %v517 = vunpack.c.l.b16 %v210
      %v518 = vunpack.c.l.b16 %v211
      %v519 = vunpack.c.l.b16 %v212
      %v520 = vunpack.c.l.b16 %v213
      %v521 = vpack.c.b16 %v506, %v505
      %v522 = vpack.c.b16 %v508, %v507
      %v523 = vpack.c.b16 %v510, %v509
      %v524 = vpack.c.b16 %v512, %v511
      %v525 = vpack.c.b16 %v514, %v513
      %v526 = vpack.c.b16 %v516, %v515
      %v527 = vpack.c.b16 %v518, %v517
      %v528 = vpack.c.b16 %v520, %v519
      %537 = vmatprep.subr.bf16.mxu0 0
      %538 = vmatpush1.bf16.msra.mxu0 %v521
      %539 = vmatprep.subr.bf16.mxu0 0
      %540 = vmatpush1.bf16.msra.mxu0 %v522
      %541 = vmatprep.subr.bf16.mxu0 0
      %542 = vmatpush1.bf16.msra.mxu0 %v523
      %543 = vmatprep.subr.bf16.mxu0 0
      %544 = vmatpush1.bf16.msra.mxu0 %v524
      %545 = vmatprep.subr.bf16.mxu0 0
      %546 = vmatpush1.bf16.msra.mxu0 %v525
      %547 = vmatprep.subr.bf16.mxu0 0
      %548 = vmatpush1.bf16.msra.mxu0 %v526
      %549 = vmatprep.subr.bf16.mxu0 0
      %550 = vmatpush1.bf16.msra.mxu0 %v527
      %551 = vmatprep.subr.bf16.mxu0 0
      %552 = vmatpush1.bf16.msra.mxu0 %v528
      %553 = vmatprep.subr.bf16.mxu0 0
      %554 = vmatpush1.bf16.msra.mxu0 0
      %555 = vmatprep.subr.bf16.mxu0 0
      %556 = vmatpush1.bf16.msra.mxu0 0
      %557 = vmatprep.subr.bf16.mxu0 0
      %558 = vmatpush1.bf16.msra.mxu0 0
      %559 = vmatprep.subr.bf16.mxu0 0
      %560 = vmatpush1.bf16.msra.mxu0 0
      %561 = vmatprep.subr.bf16.mxu0 0
      %562 = vmatpush1.bf16.msra.mxu0 0
      %563 = vmatprep.subr.bf16.mxu0 0
      %564 = vmatpush1.bf16.msra.mxu0 0
      %565 = vmatprep.subr.bf16.mxu0 0
      %566 = vmatpush1.bf16.msra.mxu0 0
      %567 = vmatprep.subr.bf16.mxu0 0
      %568 = vmatpush1.bf16.msra.mxu0 0
      %569 = vmatprep.mubr.bf16.mxu0 0
      %570 = vmatmul.mubr.bf16.gmra.mrb[0].mxu0 %v473
      %v571 = vpop.f32.mrb[0].mxu0
      %v572 = vadd.f32 %v379, %v571
      %v573 = vpop.f32.mrb[0].mxu0
      %v574 = vpop.f32.mrb[0].mxu0
      %v575 = vadd.f32 %v382, %v574
      %v576 = vpop.f32.mrb[0].mxu0
      %577 = vmatprep.mubr.bf16.mxu0 0
      %578 = vmatmul.mubr.bf16.gmra.mrb[0].mxu0 %v474
      %v579 = vpop.f32.mrb[0].mxu0
      %v580 = vadd.f32 %v387, %v579
      %v581 = vpop.f32.mrb[0].mxu0
      %v582 = vpop.f32.mrb[0].mxu0
      %v583 = vadd.f32 %v390, %v582
      %v584 = vpop.f32.mrb[0].mxu0
      %585 = vmatprep.mubr.bf16.mxu0 0
      %586 = vmatmul.mubr.bf16.gmra.mrb[0].mxu0 %v475
      %v587 = vpop.f32.mrb[0].mxu0
      %v588 = vadd.f32 %v395, %v587
      %v589 = vpop.f32.mrb[0].mxu0
      %v590 = vpop.f32.mrb[0].mxu0
      %v591 = vadd.f32 %v398, %v590
      %v592 = vpop.f32.mrb[0].mxu0
      %593 = vmatprep.mubr.bf16.mxu0 0
      %594 = vmatmul.mubr.bf16.gmra.mrb[0].mxu0 %v476
      %v595 = vpop.f32.mrb[0].mxu0
      %v596 = vadd.f32 %v403, %v595
      %v597 = vpop.f32.mrb[0].mxu0
      %v598 = vpop.f32.mrb[0].mxu0
      %v599 = vadd.f32 %v406, %v598
      %v600 = vpop.f32.mrb[0].mxu0
      %601 = vmatprep.mubr.bf16.mxu0 0
      %602 = vmatmul.mubr.bf16.gmra.mrb[0].mxu0 %v477
      %v603 = vpop.f32.mrb[0].mxu0
      %v604 = vadd.f32 %v411, %v603
      %v605 = vpop.f32.mrb[0].mxu0
      %v606 = vpop.f32.mrb[0].mxu0
      %v607 = vadd.f32 %v414, %v606
      %v608 = vpop.f32.mrb[0].mxu0
      %609 = vmatprep.mubr.bf16.mxu0 0
      %610 = vmatmul.mubr.bf16.gmra.mrb[0].mxu0 %v478
      %v611 = vpop.f32.mrb[0].mxu0
      %v612 = vadd.f32 %v419, %v611
      %v613 = vpop.f32.mrb[0].mxu0
      %v614 = vpop.f32.mrb[0].mxu0
      %v615 = vadd.f32 %v422, %v614
      %v616 = vpop.f32.mrb[0].mxu0
      %617 = vmatprep.mubr.bf16.mxu0 0
      %618 = vmatmul.mubr.bf16.gmra.mrb[0].mxu0 %v479
      %v619 = vpop.f32.mrb[0].mxu0
      %v620 = vadd.f32 %v427, %v619
      %v621 = vpop.f32.mrb[0].mxu0
      %v622 = vpop.f32.mrb[0].mxu0
      %v623 = vadd.f32 %v430, %v622
      %v624 = vpop.f32.mrb[0].mxu0
      %625 = vmatprep.mubr.bf16.mxu0 0
      %626 = vmatmul.mubr.bf16.gmra.mrb[0].mxu0 %v480
      %v627 = vpop.f32.mrb[0].mxu0
      %v628 = vadd.f32 %v435, %v627
      %v629 = vpop.f32.mrb[0].mxu0
      %v630 = vpop.f32.mrb[0].mxu0
      %v631 = vadd.f32 %v438, %v630
      %v632 = vpop.f32.mrb[0].mxu0
      %633 = vdwg.mxu0
      %s634 = scalar_lea.vmem %s165, 16
      %v635 = vld [vmem:[%s634] sm:$0xf]
      %v636 = vld [vmem:[%s634 + $0x4] sm:$0xf]
      %v637 = vld [vmem:[%s634 + $0x8] sm:$0xf]
      %v638 = vld [vmem:[%s634 + $0xc] sm:$0xf]
      %v639 = vld [vmem:[%s634 + $0x10] sm:$0xf]
      %v640 = vld [vmem:[%s634 + $0x14] sm:$0xf]
      %v641 = vld [vmem:[%s634 + $0x18] sm:$0xf]
      %v642 = vld [vmem:[%s634 + $0x1c] sm:$0xf]
      %v643 = vld [vmem:[%s634 + $0x20] sm:$0xf]
      %v644 = vld [vmem:[%s634 + $0x24] sm:$0xf]
      %v645 = vld [vmem:[%s634 + $0x28] sm:$0xf]
      %v646 = vld [vmem:[%s634 + $0x2c] sm:$0xf]
      %v647 = vld [vmem:[%s634 + $0x30] sm:$0xf]
      %v648 = vld [vmem:[%s634 + $0x34] sm:$0xf]
      %v649 = vld [vmem:[%s634 + $0x38] sm:$0xf]
      %v650 = vld [vmem:[%s634 + $0x3c] sm:$0xf]
      %s651 = scalar_lea.vmem %s1, 128
      %v652 = vld [vmem:[%s651] sm:$0xf]
      %v653 = vld [vmem:[%s651 + $0x4] sm:$0xf]
      %v654 = vld [vmem:[%s651 + $0x8] sm:$0xf]
      %v655 = vld [vmem:[%s651 + $0xc] sm:$0xf]
      %v656 = vld [vmem:[%s651 + $0x10] sm:$0xf]
      %v657 = vld [vmem:[%s651 + $0x14] sm:$0xf]
      %v658 = vld [vmem:[%s651 + $0x18] sm:$0xf]
      %v659 = vld [vmem:[%s651 + $0x1c] sm:$0xf]
      %v660 = vld [vmem:[%s651 + $0x20] sm:$0xf]
      %v661 = vld [vmem:[%s651 + $0x24] sm:$0xf]
      %v662 = vld [vmem:[%s651 + $0x28] sm:$0xf]
      %v663 = vld [vmem:[%s651 + $0x2c] sm:$0xf]
      %v664 = vld [vmem:[%s651 + $0x30] sm:$0xf]
      %v665 = vld [vmem:[%s651 + $0x34] sm:$0xf]
      %v666 = vld [vmem:[%s651 + $0x38] sm:$0xf]
      %v667 = vld [vmem:[%s651 + $0x3c] sm:$0xf]
      %v684 = vunpack.c.l.b16 %v635
      %v685 = vunpack.c.l.b16 %v636
      %v686 = vunpack.c.l.b16 %v637
      %v687 = vunpack.c.l.b16 %v638
      %v688 = vunpack.c.l.b16 %v639
      %v689 = vunpack.c.l.b16 %v640
      %v690 = vunpack.c.l.b16 %v641
      %v691 = vunpack.c.l.b16 %v642
      %v692 = vunpack.c.l.b16 %v643
      %v693 = vunpack.c.l.b16 %v644
      %v694 = vunpack.c.l.b16 %v645
      %v695 = vunpack.c.l.b16 %v646
      %v696 = vunpack.c.l.b16 %v647
      %v697 = vunpack.c.l.b16 %v648
      %v698 = vunpack.c.l.b16 %v649
      %v699 = vunpack.c.l.b16 %v650
      %v700 = vpack.c.b16 %v685, %v684
      %v701 = vpack.c.b16 %v687, %v686
      %v702 = vpack.c.b16 %v689, %v688
      %v703 = vpack.c.b16 %v691, %v690
      %v704 = vpack.c.b16 %v693, %v692
      %v705 = vpack.c.b16 %v695, %v694
      %v706 = vpack.c.b16 %v697, %v696
      %v707 = vpack.c.b16 %v699, %v698
      %v732 = vunpack.c.l.b16 %v652
      %v733 = vunpack.c.l.b16 %v653
      %v734 = vunpack.c.l.b16 %v654
      %v735 = vunpack.c.l.b16 %v655
      %v736 = vunpack.c.l.b16 %v656
      %v737 = vunpack.c.l.b16 %v657
      %v738 = vunpack.c.l.b16 %v658
      %v739 = vunpack.c.l.b16 %v659
      %v740 = vunpack.c.l.b16 %v660
      %v741 = vunpack.c.l.b16 %v661
      %v742 = vunpack.c.l.b16 %v662
      %v743 = vunpack.c.l.b16 %v663
      %v744 = vunpack.c.l.b16 %v664
      %v745 = vunpack.c.l.b16 %v665
      %v746 = vunpack.c.l.b16 %v666
      %v747 = vunpack.c.l.b16 %v667
      %v748 = vpack.c.b16 %v733, %v732
      %v749 = vpack.c.b16 %v735, %v734
      %v750 = vpack.c.b16 %v737, %v736
      %v751 = vpack.c.b16 %v739, %v738
      %v752 = vpack.c.b16 %v741, %v740
      %v753 = vpack.c.b16 %v743, %v742
      %v754 = vpack.c.b16 %v745, %v744
      %v755 = vpack.c.b16 %v747, %v746
      %764 = vmatprep.subr.bf16.mxu0 0
      %765 = vmatpush1.bf16.msra.mxu0 %v748
      %766 = vmatprep.subr.bf16.mxu0 0
      %767 = vmatpush1.bf16.msra.mxu0 %v749
      %768 = vmatprep.subr.bf16.mxu0 0
      %769 = vmatpush1.bf16.msra.mxu0 %v750
      %770 = vmatprep.subr.bf16.mxu0 0
      %771 = vmatpush1.bf16.msra.mxu0 %v751
      %772 = vmatprep.subr.bf16.mxu0 0
      %773 = vmatpush1.bf16.msra.mxu0 %v752
      %774 = vmatprep.subr.bf16.mxu0 0
      %775 = vmatpush1.bf16.msra.mxu0 %v753
      %776 = vmatprep.subr.bf16.mxu0 0
      %777 = vmatpush1.bf16.msra.mxu0 %v754
      %778 = vmatprep.subr.bf16.mxu0 0
      %779 = vmatpush1.bf16.msra.mxu0 %v755
      %780 = vmatprep.subr.bf16.mxu0 0
      %781 = vmatpush1.bf16.msra.mxu0 0
      %782 = vmatprep.subr.bf16.mxu0 0
      %783 = vmatpush1.bf16.msra.mxu0 0
      %784 = vmatprep.subr.bf16.mxu0 0
      %785 = vmatpush1.bf16.msra.mxu0 0
      %786 = vmatprep.subr.bf16.mxu0 0
      %787 = vmatpush1.bf16.msra.mxu0 0
      %788 = vmatprep.subr.bf16.mxu0 0
      %789 = vmatpush1.bf16.msra.mxu0 0
      %790 = vmatprep.subr.bf16.mxu0 0
      %791 = vmatpush1.bf16.msra.mxu0 0
      %792 = vmatprep.subr.bf16.mxu0 0
      %793 = vmatpush1.bf16.msra.mxu0 0
      %794 = vmatprep.subr.bf16.mxu0 0
      %795 = vmatpush1.bf16.msra.mxu0 0
      %796 = vmatprep.mubr.bf16.mxu0 0
      %797 = vmatmul.mubr.bf16.gmra.mrb[0].mxu0 %v700
      %v798 = vpop.f32.mrb[0].mxu0
      %v799 = vadd.f32 0.0, %v798
      %v800 = vpop.f32.mrb[0].mxu0
      %v801 = vpop.f32.mrb[0].mxu0
      %v802 = vadd.f32 0.0, %v801
      %v803 = vpop.f32.mrb[0].mxu0
      %804 = vmatprep.mubr.bf16.mxu0 0
      %805 = vmatmul.mubr.bf16.gmra.mrb[0].mxu0 %v701
      %v806 = vpop.f32.mrb[0].mxu0
      %v807 = vadd.f32 0.0, %v806
      %v808 = vpop.f32.mrb[0].mxu0
      %v809 = vpop.f32.mrb[0].mxu0
      %v810 = vadd.f32 0.0, %v809
      %v811 = vpop.f32.mrb[0].mxu0
      %812 = vmatprep.mubr.bf16.mxu0 0
      %813 = vmatmul.mubr.bf16.gmra.mrb[0].mxu0 %v702
      %v814 = vpop.f32.mrb[0].mxu0
      %v815 = vadd.f32 0.0, %v814
      %v816 = vpop.f32.mrb[0].mxu0
      %v817 = vpop.f32.mrb[0].mxu0
      %v818 = vadd.f32 0.0, %v817
      %v819 = vpop.f32.mrb[0].mxu0
      %820 = vmatprep.mubr.bf16.mxu0 0
      %821 = vmatmul.mubr.bf16.gmra.mrb[0].mxu0 %v703
      %v822 = vpop.f32.mrb[0].mxu0
      %v823 = vadd.f32 0.0, %v822
      %v824 = vpop.f32.mrb[0].mxu0
      %v825 = vpop.f32.mrb[0].mxu0
      %v826 = vadd.f32 0.0, %v825
      %v827 = vpop.f32.mrb[0].mxu0
      %828 = vmatprep.mubr.bf16.mxu0 0
      %829 = vmatmul.mubr.bf16.gmra.mrb[0].mxu0 %v704
      %v830 = vpop.f32.mrb[0].mxu0
      %v831 = vadd.f32 0.0, %v830
      %v832 = vpop.f32.mrb[0].mxu0
      %v833 = vpop.f32.mrb[0].mxu0
      %v834 = vadd.f32 0.0, %v833
      %v835 = vpop.f32.mrb[0].mxu0
      %836 = vmatprep.mubr.bf16.mxu0 0
      %837 = vmatmul.mubr.bf16.gmra.mrb[0].mxu0 %v705
      %v838 = vpop.f32.mrb[0].mxu0
      %v839 = vadd.f32 0.0, %v838
      %v840 = vpop.f32.mrb[0].mxu0
      %v841 = vpop.f32.mrb[0].mxu0
      %v842 = vadd.f32 0.0, %v841
      %v843 = vpop.f32.mrb[0].mxu0
      %844 = vmatprep.mubr.bf16.mxu0 0
      %845 = vmatmul.mubr.bf16.gmra.mrb[0].mxu0 %v706
      %v846 = vpop.f32.mrb[0].mxu0
      %v847 = vadd.f32 0.0, %v846
      %v848 = vpop.f32.mrb[0].mxu0
      %v849 = vpop.f32.mrb[0].mxu0
      %v850 = vadd.f32 0.0, %v849
      %v851 = vpop.f32.mrb[0].mxu0
      %852 = vmatprep.mubr.bf16.mxu0 0
      %853 = vmatmul.mubr.bf16.gmra.mrb[0].mxu0 %v707
      %v854 = vpop.f32.mrb[0].mxu0
      %v855 = vadd.f32 0.0, %v854
      %v856 = vpop.f32.mrb[0].mxu0
      %v857 = vpop.f32.mrb[0].mxu0
      %v858 = vadd.f32 0.0, %v857
      %v859 = vpop.f32.mrb[0].mxu0
      %860 = vdwg.mxu0
      %v861 = vadd.f32 %v572, %v799
      %v862 = vadd.f32 %v575, %v802
      %v863 = vadd.f32 %v580, %v807
      %v864 = vadd.f32 %v583, %v810
      %v865 = vadd.f32 %v588, %v815
      %v866 = vadd.f32 %v591, %v818
      %v867 = vadd.f32 %v596, %v823
      %v868 = vadd.f32 %v599, %v826
      %v869 = vadd.f32 %v604, %v831
      %v870 = vadd.f32 %v607, %v834
      %v871 = vadd.f32 %v612, %v839
      %v872 = vadd.f32 %v615, %v842
      %v873 = vadd.f32 %v620, %v847
      %v874 = vadd.f32 %v623, %v850
      %v875 = vadd.f32 %v628, %v855
      %v876 = vadd.f32 %v631, %v858
      %v878 = vlaneseq
      %v879 = vshrl.u32 %v878, 7
      %v880 = vsub.s32 0, %v879
      %v881 = vrot.slane %v172, %v880
      %v883 = vadd.f32 %v861, %v881
      %v884 = vadd.f32 %v862, %v881
      %v885 = vadd.f32 %v863, %v881
      %v886 = vadd.f32 %v864, %v881
      %v887 = vadd.f32 %v865, %v881
      %v888 = vadd.f32 %v866, %v881
      %v889 = vadd.f32 %v867, %v881
      %v890 = vadd.f32 %v868, %v881
      %v891 = vadd.f32 %v869, %v881
      %v892 = vadd.f32 %v870, %v881
      %v893 = vadd.f32 %v871, %v881
      %v894 = vadd.f32 %v872, %v881
      %v895 = vadd.f32 %v873, %v881
      %v896 = vadd.f32 %v874, %v881
      %v897 = vadd.f32 %v875, %v881
      %v898 = vadd.f32 %v876, %v881
      %v899 = vmax.f32 %v883, 0.0
      %v900 = vmax.f32 %v884, 0.0
      %v901 = vmax.f32 %v885, 0.0
      %v902 = vmax.f32 %v886, 0.0
      %v903 = vmax.f32 %v887, 0.0
      %v904 = vmax.f32 %v888, 0.0
      %v905 = vmax.f32 %v889, 0.0
      %v906 = vmax.f32 %v890, 0.0
      %v907 = vmax.f32 %v891, 0.0
      %v908 = vmax.f32 %v892, 0.0
      %v909 = vmax.f32 %v893, 0.0
      %v910 = vmax.f32 %v894, 0.0
      %v911 = vmax.f32 %v895, 0.0
      %v912 = vmax.f32 %v896, 0.0
      %v913 = vmax.f32 %v897, 0.0
      %v914 = vmax.f32 %v898, 0.0
      %v915 = vmul.f32 %v899, %v180
      %v916 = vmul.f32 %v900, %v181
      %v917 = vmul.f32 %v901, %v180
      %v918 = vmul.f32 %v902, %v181
      %v919 = vmul.f32 %v903, %v180
      %v920 = vmul.f32 %v904, %v181
      %v921 = vmul.f32 %v905, %v180
      %v922 = vmul.f32 %v906, %v181
      %v923 = vmul.f32 %v907, %v180
      %v924 = vmul.f32 %v908, %v181
      %v925 = vmul.f32 %v909, %v180
      %v926 = vmul.f32 %v910, %v181
      %v927 = vmul.f32 %v911, %v180
      %v928 = vmul.f32 %v912, %v181
      %v929 = vmul.f32 %v913, %v180
      %v930 = vmul.f32 %v914, %v181
      %v931 = vpack.c.bf16 %v916, %v915
      %v932 = vpack.c.bf16 %v918, %v917
      %v933 = vpack.c.bf16 %v920, %v919
      %v934 = vpack.c.bf16 %v922, %v921
      %v935 = vpack.c.bf16 %v924, %v923
      %v936 = vpack.c.bf16 %v926, %v925
      %v937 = vpack.c.bf16 %v928, %v927
      %v938 = vpack.c.bf16 %v930, %v929
      %v947 = vunpack.c.l.b16 %v931
      %v948 = vunpack.c.h.b16 %v931
      %v949 = vunpack.c.l.b16 %v932
      %v950 = vunpack.c.h.b16 %v932
      %v951 = vunpack.c.l.b16 %v933
      %v952 = vunpack.c.h.b16 %v933
      %v953 = vunpack.c.l.b16 %v934
      %v954 = vunpack.c.h.b16 %v934
      %v955 = vunpack.c.l.b16 %v935
      %v956 = vunpack.c.h.b16 %v935
      %v957 = vunpack.c.l.b16 %v936
      %v958 = vunpack.c.h.b16 %v936
      %v959 = vunpack.c.l.b16 %v937
      %v960 = vunpack.c.h.b16 %v937
      %v961 = vunpack.c.l.b16 %v938
      %v962 = vunpack.c.h.b16 %v938
      %v963 = vpack.c.b16 %v947, %v947
      %v964 = vpack.c.b16 %v948, %v948
      %v965 = vpack.c.b16 %v949, %v949
      %v966 = vpack.c.b16 %v950, %v950
      %v967 = vpack.c.b16 %v951, %v951
      %v968 = vpack.c.b16 %v952, %v952
      %v969 = vpack.c.b16 %v953, %v953
      %v970 = vpack.c.b16 %v954, %v954
      %v971 = vpack.c.b16 %v955, %v955
      %v972 = vpack.c.b16 %v956, %v956
      %v973 = vpack.c.b16 %v957, %v957
      %v974 = vpack.c.b16 %v958, %v958
      %v975 = vpack.c.b16 %v959, %v959
      %v976 = vpack.c.b16 %v960, %v960
      %v977 = vpack.c.b16 %v961, %v961
      %v978 = vpack.c.b16 %v962, %v962
      %995 = vst [vmem:[%s170] sm:$0xf] %v963
      %996 = vst [vmem:[%s170 + $0x4] sm:$0xf] %v964
      %997 = vst [vmem:[%s170 + $0x8] sm:$0xf] %v965
      %998 = vst [vmem:[%s170 + $0xc] sm:$0xf] %v966
      %999 = vst [vmem:[%s170 + $0x10] sm:$0xf] %v967
      %1000 = vst [vmem:[%s170 + $0x14] sm:$0xf] %v968
      %1001 = vst [vmem:[%s170 + $0x18] sm:$0xf] %v969
      %1002 = vst [vmem:[%s170 + $0x1c] sm:$0xf] %v970
      %1003 = vst [vmem:[%s170 + $0x20] sm:$0xf] %v971
      %1004 = vst [vmem:[%s170 + $0x24] sm:$0xf] %v972
      %1005 = vst [vmem:[%s170 + $0x28] sm:$0xf] %v973
      %1006 = vst [vmem:[%s170 + $0x2c] sm:$0xf] %v974
      %1007 = vst [vmem:[%s170 + $0x30] sm:$0xf] %v975
      %1008 = vst [vmem:[%s170 + $0x34] sm:$0xf] %v976
      %1009 = vst [vmem:[%s170 + $0x38] sm:$0xf] %v977
      %1010 = vst [vmem:[%s170 + $0x3c] sm:$0xf] %v978
      %s1011 = scalar_lea.vmem %s165, 64
      %v1012 = vld [vmem:[%s1011] sm:$0xf]
      %v1013 = vld [vmem:[%s1011 + $0x4] sm:$0xf]
      %v1014 = vld [vmem:[%s1011 + $0x8] sm:$0xf]
      %v1015 = vld [vmem:[%s1011 + $0xc] sm:$0xf]
      %v1016 = vld [vmem:[%s1011 + $0x10] sm:$0xf]
      %v1017 = vld [vmem:[%s1011 + $0x14] sm:$0xf]
      %v1018 = vld [vmem:[%s1011 + $0x18] sm:$0xf]
      %v1019 = vld [vmem:[%s1011 + $0x1c] sm:$0xf]
      %v1020 = vld [vmem:[%s1] sm:$0xf]
      %v1021 = vld [vmem:[%s1 + $0x4] sm:$0xf]
      %v1022 = vld [vmem:[%s1 + $0x8] sm:$0xf]
      %v1023 = vld [vmem:[%s1 + $0xc] sm:$0xf]
      %v1024 = vld [vmem:[%s1 + $0x10] sm:$0xf]
      %v1025 = vld [vmem:[%s1 + $0x14] sm:$0xf]
      %v1026 = vld [vmem:[%s1 + $0x18] sm:$0xf]
      %v1027 = vld [vmem:[%s1 + $0x1c] sm:$0xf]
      %v1028 = vld [vmem:[%s1 + $0x20] sm:$0xf]
      %v1029 = vld [vmem:[%s1 + $0x24] sm:$0xf]
      %v1030 = vld [vmem:[%s1 + $0x28] sm:$0xf]
      %v1031 = vld [vmem:[%s1 + $0x2c] sm:$0xf]
      %v1032 = vld [vmem:[%s1 + $0x30] sm:$0xf]
      %v1033 = vld [vmem:[%s1 + $0x34] sm:$0xf]
      %v1034 = vld [vmem:[%s1 + $0x38] sm:$0xf]
      %v1035 = vld [vmem:[%s1 + $0x3c] sm:$0xf]
      %s1036 = scalar_lea.vmem %s165, 72
      %v1037 = vld [vmem:[%s1036] sm:$0xf]
      %v1038 = vld [vmem:[%s1036 + $0x4] sm:$0xf]
      %v1039 = vld [vmem:[%s1036 + $0x8] sm:$0xf]
      %v1040 = vld [vmem:[%s1036 + $0xc] sm:$0xf]
      %v1041 = vld [vmem:[%s1036 + $0x10] sm:$0xf]
      %v1042 = vld [vmem:[%s1036 + $0x14] sm:$0xf]
      %v1043 = vld [vmem:[%s1036 + $0x18] sm:$0xf]
      %v1044 = vld [vmem:[%s1036 + $0x1c] sm:$0xf]
      %v1045 = vld [vmem:[%s231] sm:$0xf]
      %v1046 = vld [vmem:[%s231 + $0x4] sm:$0xf]
      %v1047 = vld [vmem:[%s231 + $0x8] sm:$0xf]
      %v1048 = vld [vmem:[%s231 + $0xc] sm:$0xf]
      %v1049 = vld [vmem:[%s231 + $0x10] sm:$0xf]
      %v1050 = vld [vmem:[%s231 + $0x14] sm:$0xf]
      %v1051 = vld [vmem:[%s231 + $0x18] sm:$0xf]
      %v1052 = vld [vmem:[%s231 + $0x1c] sm:$0xf]
      %v1053 = vld [vmem:[%s231 + $0x20] sm:$0xf]
      %v1054 = vld [vmem:[%s231 + $0x24] sm:$0xf]
      %v1055 = vld [vmem:[%s231 + $0x28] sm:$0xf]
      %v1056 = vld [vmem:[%s231 + $0x2c] sm:$0xf]
      %v1057 = vld [vmem:[%s231 + $0x30] sm:$0xf]
      %v1058 = vld [vmem:[%s231 + $0x34] sm:$0xf]
      %v1059 = vld [vmem:[%s231 + $0x38] sm:$0xf]
      %v1060 = vld [vmem:[%s231 + $0x3c] sm:$0xf]
      %v1069 = vunpack.c.l.b16 %v1037
      %v1070 = vunpack.c.l.b16 %v1038
      %v1071 = vunpack.c.l.b16 %v1039
      %v1072 = vunpack.c.l.b16 %v1040
      %v1073 = vunpack.c.l.b16 %v1041
      %v1074 = vunpack.c.l.b16 %v1042
      %v1075 = vunpack.c.l.b16 %v1043
      %v1076 = vunpack.c.l.b16 %v1044
      %v1077 = vpack.c.b16 %v1070, %v1069
      %v1078 = vpack.c.b16 %v1072, %v1071
      %v1079 = vpack.c.b16 %v1074, %v1073
      %v1080 = vpack.c.b16 %v1076, %v1075
      %v1101 = vunpack.c.l.b16 %v1045
      %v1102 = vunpack.c.l.b16 %v1046
      %v1103 = vunpack.c.l.b16 %v1047
      %v1104 = vunpack.c.l.b16 %v1048
      %v1105 = vunpack.c.l.b16 %v1049
      %v1106 = vunpack.c.l.b16 %v1050
      %v1107 = vunpack.c.l.b16 %v1051
      %v1108 = vunpack.c.l.b16 %v1052
      %v1109 = vunpack.c.l.b16 %v1053
      %v1110 = vunpack.c.l.b16 %v1054
      %v1111 = vunpack.c.l.b16 %v1055
      %v1112 = vunpack.c.l.b16 %v1056
      %v1113 = vunpack.c.l.b16 %v1057
      %v1114 = vunpack.c.l.b16 %v1058
      %v1115 = vunpack.c.l.b16 %v1059
      %v1116 = vunpack.c.l.b16 %v1060
      %v1117 = vpack.c.b16 %v1102, %v1101
      %v1118 = vpack.c.b16 %v1104, %v1103
      %v1119 = vpack.c.b16 %v1106, %v1105
      %v1120 = vpack.c.b16 %v1108, %v1107
      %v1121 = vpack.c.b16 %v1110, %v1109
      %v1122 = vpack.c.b16 %v1112, %v1111
      %v1123 = vpack.c.b16 %v1114, %v1113
      %v1124 = vpack.c.b16 %v1116, %v1115
      %1133 = vmatprep.subr.bf16.mxu0 0
      %1134 = vmatpush1.bf16.msra.mxu0 %v1117
      %1135 = vmatprep.subr.bf16.mxu0 0
      %1136 = vmatpush1.bf16.msra.mxu0 %v1118
      %1137 = vmatprep.subr.bf16.mxu0 0
      %1138 = vmatpush1.bf16.msra.mxu0 %v1119
      %1139 = vmatprep.subr.bf16.mxu0 0
      %1140 = vmatpush1.bf16.msra.mxu0 %v1120
      %1141 = vmatprep.subr.bf16.mxu0 0
      %1142 = vmatpush1.bf16.msra.mxu0 %v1121
      %1143 = vmatprep.subr.bf16.mxu0 0
      %1144 = vmatpush1.bf16.msra.mxu0 %v1122
      %1145 = vmatprep.subr.bf16.mxu0 0
      %1146 = vmatpush1.bf16.msra.mxu0 %v1123
      %1147 = vmatprep.subr.bf16.mxu0 0
      %1148 = vmatpush1.bf16.msra.mxu0 %v1124
      %1149 = vmatprep.subr.bf16.mxu0 0
      %1150 = vmatpush1.bf16.msra.mxu0 0
      %1151 = vmatprep.subr.bf16.mxu0 0
      %1152 = vmatpush1.bf16.msra.mxu0 0
      %1153 = vmatprep.subr.bf16.mxu0 0
      %1154 = vmatpush1.bf16.msra.mxu0 0
      %1155 = vmatprep.subr.bf16.mxu0 0
      %1156 = vmatpush1.bf16.msra.mxu0 0
      %1157 = vmatprep.subr.bf16.mxu0 0
      %1158 = vmatpush1.bf16.msra.mxu0 0
      %1159 = vmatprep.subr.bf16.mxu0 0
      %1160 = vmatpush1.bf16.msra.mxu0 0
      %1161 = vmatprep.subr.bf16.mxu0 0
      %1162 = vmatpush1.bf16.msra.mxu0 0
      %1163 = vmatprep.subr.bf16.mxu0 0
      %1164 = vmatpush1.bf16.msra.mxu0 0
      %1165 = vmatprep.mubr.bf16.mxu0 0
      %1166 = vmatmul.mubr.bf16.gmra.mrb[0].mxu0 %v1077
      %v1167 = vpop.f32.mrb[0].mxu0
      %v1168 = vadd.f32 0.0, %v1167
      %v1169 = vpop.f32.mrb[0].mxu0
      %v1170 = vpop.f32.mrb[0].mxu0
      %v1171 = vadd.f32 0.0, %v1170
      %v1172 = vpop.f32.mrb[0].mxu0
      %1173 = vmatprep.mubr.bf16.mxu0 0
      %1174 = vmatmul.mubr.bf16.gmra.mrb[0].mxu0 %v1078
      %v1175 = vpop.f32.mrb[0].mxu0
      %v1176 = vadd.f32 0.0, %v1175
      %v1177 = vpop.f32.mrb[0].mxu0
      %v1178 = vpop.f32.mrb[0].mxu0
      %v1179 = vadd.f32 0.0, %v1178
      %v1180 = vpop.f32.mrb[0].mxu0
      %1181 = vmatprep.mubr.bf16.mxu0 0
      %1182 = vmatmul.mubr.bf16.gmra.mrb[0].mxu0 %v1079
      %v1183 = vpop.f32.mrb[0].mxu0
      %v1184 = vadd.f32 0.0, %v1183
      %v1185 = vpop.f32.mrb[0].mxu0
      %v1186 = vpop.f32.mrb[0].mxu0
      %v1187 = vadd.f32 0.0, %v1186
      %v1188 = vpop.f32.mrb[0].mxu0
      %1189 = vmatprep.mubr.bf16.mxu0 0
      %1190 = vmatmul.mubr.bf16.gmra.mrb[0].mxu0 %v1080
      %v1191 = vpop.f32.mrb[0].mxu0
      %v1192 = vadd.f32 0.0, %v1191
      %v1193 = vpop.f32.mrb[0].mxu0
      %v1194 = vpop.f32.mrb[0].mxu0
      %v1195 = vadd.f32 0.0, %v1194
      %v1196 = vpop.f32.mrb[0].mxu0
      %1197 = vdwg.mxu0
      %v1206 = vunpack.c.l.b16 %v1012
      %v1207 = vunpack.c.l.b16 %v1013
      %v1208 = vunpack.c.l.b16 %v1014
      %v1209 = vunpack.c.l.b16 %v1015
      %v1210 = vunpack.c.l.b16 %v1016
      %v1211 = vunpack.c.l.b16 %v1017
      %v1212 = vunpack.c.l.b16 %v1018
      %v1213 = vunpack.c.l.b16 %v1019
      %v1214 = vpack.c.b16 %v1207, %v1206
      %v1215 = vpack.c.b16 %v1209, %v1208
      %v1216 = vpack.c.b16 %v1211, %v1210
      %v1217 = vpack.c.b16 %v1213, %v1212
      %v1238 = vunpack.c.l.b16 %v1020
      %v1239 = vunpack.c.l.b16 %v1021
      %v1240 = vunpack.c.l.b16 %v1022
      %v1241 = vunpack.c.l.b16 %v1023
      %v1242 = vunpack.c.l.b16 %v1024
      %v1243 = vunpack.c.l.b16 %v1025
      %v1244 = vunpack.c.l.b16 %v1026
      %v1245 = vunpack.c.l.b16 %v1027
      %v1246 = vunpack.c.l.b16 %v1028
      %v1247 = vunpack.c.l.b16 %v1029
      %v1248 = vunpack.c.l.b16 %v1030
      %v1249 = vunpack.c.l.b16 %v1031
      %v1250 = vunpack.c.l.b16 %v1032
      %v1251 = vunpack.c.l.b16 %v1033
      %v1252 = vunpack.c.l.b16 %v1034
      %v1253 = vunpack.c.l.b16 %v1035
      %v1254 = vpack.c.b16 %v1239, %v1238
      %v1255 = vpack.c.b16 %v1241, %v1240
      %v1256 = vpack.c.b16 %v1243, %v1242
      %v1257 = vpack.c.b16 %v1245, %v1244
      %v1258 = vpack.c.b16 %v1247, %v1246
      %v1259 = vpack.c.b16 %v1249, %v1248
      %v1260 = vpack.c.b16 %v1251, %v1250
      %v1261 = vpack.c.b16 %v1253, %v1252
      %1270 = vmatprep.subr.bf16.mxu0 0
      %1271 = vmatpush1.bf16.msra.mxu0 %v1254
      %1272 = vmatprep.subr.bf16.mxu0 0
      %1273 = vmatpush1.bf16.msra.mxu0 %v1255
      %1274 = vmatprep.subr.bf16.mxu0 0
      %1275 = vmatpush1.bf16.msra.mxu0 %v1256
      %1276 = vmatprep.subr.bf16.mxu0 0
      %1277 = vmatpush1.bf16.msra.mxu0 %v1257
      %1278 = vmatprep.subr.bf16.mxu0 0
      %1279 = vmatpush1.bf16.msra.mxu0 %v1258
      %1280 = vmatprep.subr.bf16.mxu0 0
      %1281 = vmatpush1.bf16.msra.mxu0 %v1259
      %1282 = vmatprep.subr.bf16.mxu0 0
      %1283 = vmatpush1.bf16.msra.mxu0 %v1260
      %1284 = vmatprep.subr.bf16.mxu0 0
      %1285 = vmatpush1.bf16.msra.mxu0 %v1261
      %1286 = vmatprep.subr.bf16.mxu0 0
      %1287 = vmatpush1.bf16.msra.mxu0 0
      %1288 = vmatprep.subr.bf16.mxu0 0
      %1289 = vmatpush1.bf16.msra.mxu0 0
      %1290 = vmatprep.subr.bf16.mxu0 0
      %1291 = vmatpush1.bf16.msra.mxu0 0
      %1292 = vmatprep.subr.bf16.mxu0 0
      %1293 = vmatpush1.bf16.msra.mxu0 0
      %1294 = vmatprep.subr.bf16.mxu0 0
      %1295 = vmatpush1.bf16.msra.mxu0 0
      %1296 = vmatprep.subr.bf16.mxu0 0
      %1297 = vmatpush1.bf16.msra.mxu0 0
      %1298 = vmatprep.subr.bf16.mxu0 0
      %1299 = vmatpush1.bf16.msra.mxu0 0
      %1300 = vmatprep.subr.bf16.mxu0 0
      %1301 = vmatpush1.bf16.msra.mxu0 0
      %1302 = vmatprep.mubr.bf16.mxu0 0
      %1303 = vmatmul.mubr.bf16.gmra.mrb[0].mxu0 %v1214
      %v1304 = vpop.f32.mrb[0].mxu0
      %v1305 = vadd.f32 %v1168, %v1304
      %v1306 = vpop.f32.mrb[0].mxu0
      %v1307 = vpop.f32.mrb[0].mxu0
      %v1308 = vadd.f32 %v1171, %v1307
      %v1309 = vpop.f32.mrb[0].mxu0
      %1310 = vmatprep.mubr.bf16.mxu0 0
      %1311 = vmatmul.mubr.bf16.gmra.mrb[0].mxu0 %v1215
      %v1312 = vpop.f32.mrb[0].mxu0
      %v1313 = vadd.f32 %v1176, %v1312
      %v1314 = vpop.f32.mrb[0].mxu0
      %v1315 = vpop.f32.mrb[0].mxu0
      %v1316 = vadd.f32 %v1179, %v1315
      %v1317 = vpop.f32.mrb[0].mxu0
      %1318 = vmatprep.mubr.bf16.mxu0 0
      %1319 = vmatmul.mubr.bf16.gmra.mrb[0].mxu0 %v1216
      %v1320 = vpop.f32.mrb[0].mxu0
      %v1321 = vadd.f32 %v1184, %v1320
      %v1322 = vpop.f32.mrb[0].mxu0
      %v1323 = vpop.f32.mrb[0].mxu0
      %v1324 = vadd.f32 %v1187, %v1323
      %v1325 = vpop.f32.mrb[0].mxu0
      %1326 = vmatprep.mubr.bf16.mxu0 0
      %1327 = vmatmul.mubr.bf16.gmra.mrb[0].mxu0 %v1217
      %v1328 = vpop.f32.mrb[0].mxu0
      %v1329 = vadd.f32 %v1192, %v1328
      %v1330 = vpop.f32.mrb[0].mxu0
      %v1331 = vpop.f32.mrb[0].mxu0
      %v1332 = vadd.f32 %v1195, %v1331
      %v1333 = vpop.f32.mrb[0].mxu0
      %1334 = vdwg.mxu0
      %s1335 = scalar_lea.vmem %s165, 80
      %v1336 = vld [vmem:[%s1335] sm:$0xf]
      %v1337 = vld [vmem:[%s1335 + $0x4] sm:$0xf]
      %v1338 = vld [vmem:[%s1335 + $0x8] sm:$0xf]
      %v1339 = vld [vmem:[%s1335 + $0xc] sm:$0xf]
      %v1340 = vld [vmem:[%s1335 + $0x10] sm:$0xf]
      %v1341 = vld [vmem:[%s1335 + $0x14] sm:$0xf]
      %v1342 = vld [vmem:[%s1335 + $0x18] sm:$0xf]
      %v1343 = vld [vmem:[%s1335 + $0x1c] sm:$0xf]
      %v1344 = vld [vmem:[%s651] sm:$0xf]
      %v1345 = vld [vmem:[%s651 + $0x4] sm:$0xf]
      %v1346 = vld [vmem:[%s651 + $0x8] sm:$0xf]
      %v1347 = vld [vmem:[%s651 + $0xc] sm:$0xf]
      %v1348 = vld [vmem:[%s651 + $0x10] sm:$0xf]
      %v1349 = vld [vmem:[%s651 + $0x14] sm:$0xf]
      %v1350 = vld [vmem:[%s651 + $0x18] sm:$0xf]
      %v1351 = vld [vmem:[%s651 + $0x1c] sm:$0xf]
      %v1352 = vld [vmem:[%s651 + $0x20] sm:$0xf]
      %v1353 = vld [vmem:[%s651 + $0x24] sm:$0xf]
      %v1354 = vld [vmem:[%s651 + $0x28] sm:$0xf]
      %v1355 = vld [vmem:[%s651 + $0x2c] sm:$0xf]
      %v1356 = vld [vmem:[%s651 + $0x30] sm:$0xf]
      %v1357 = vld [vmem:[%s651 + $0x34] sm:$0xf]
      %v1358 = vld [vmem:[%s651 + $0x38] sm:$0xf]
      %v1359 = vld [vmem:[%s651 + $0x3c] sm:$0xf]
      %v1368 = vunpack.c.l.b16 %v1336
      %v1369 = vunpack.c.l.b16 %v1337
      %v1370 = vunpack.c.l.b16 %v1338
      %v1371 = vunpack.c.l.b16 %v1339
      %v1372 = vunpack.c.l.b16 %v1340
      %v1373 = vunpack.c.l.b16 %v1341
      %v1374 = vunpack.c.l.b16 %v1342
      %v1375 = vunpack.c.l.b16 %v1343
      %v1376 = vpack.c.b16 %v1369, %v1368
      %v1377 = vpack.c.b16 %v1371, %v1370
      %v1378 = vpack.c.b16 %v1373, %v1372
      %v1379 = vpack.c.b16 %v1375, %v1374
      %v1400 = vunpack.c.l.b16 %v1344
      %v1401 = vunpack.c.l.b16 %v1345
      %v1402 = vunpack.c.l.b16 %v1346
      %v1403 = vunpack.c.l.b16 %v1347
      %v1404 = vunpack.c.l.b16 %v1348
      %v1405 = vunpack.c.l.b16 %v1349
      %v1406 = vunpack.c.l.b16 %v1350
      %v1407 = vunpack.c.l.b16 %v1351
      %v1408 = vunpack.c.l.b16 %v1352
      %v1409 = vunpack.c.l.b16 %v1353
      %v1410 = vunpack.c.l.b16 %v1354
      %v1411 = vunpack.c.l.b16 %v1355
      %v1412 = vunpack.c.l.b16 %v1356
      %v1413 = vunpack.c.l.b16 %v1357
      %v1414 = vunpack.c.l.b16 %v1358
      %v1415 = vunpack.c.l.b16 %v1359
      %v1416 = vpack.c.b16 %v1401, %v1400
      %v1417 = vpack.c.b16 %v1403, %v1402
      %v1418 = vpack.c.b16 %v1405, %v1404
      %v1419 = vpack.c.b16 %v1407, %v1406
      %v1420 = vpack.c.b16 %v1409, %v1408
      %v1421 = vpack.c.b16 %v1411, %v1410
      %v1422 = vpack.c.b16 %v1413, %v1412
      %v1423 = vpack.c.b16 %v1415, %v1414
      %1432 = vmatprep.subr.bf16.mxu0 0
      %1433 = vmatpush1.bf16.msra.mxu0 %v1416
      %1434 = vmatprep.subr.bf16.mxu0 0
      %1435 = vmatpush1.bf16.msra.mxu0 %v1417
      %1436 = vmatprep.subr.bf16.mxu0 0
      %1437 = vmatpush1.bf16.msra.mxu0 %v1418
      %1438 = vmatprep.subr.bf16.mxu0 0
      %1439 = vmatpush1.bf16.msra.mxu0 %v1419
      %1440 = vmatprep.subr.bf16.mxu0 0
      %1441 = vmatpush1.bf16.msra.mxu0 %v1420
      %1442 = vmatprep.subr.bf16.mxu0 0
      %1443 = vmatpush1.bf16.msra.mxu0 %v1421
      %1444 = vmatprep.subr.bf16.mxu0 0
      %1445 = vmatpush1.bf16.msra.mxu0 %v1422
      %1446 = vmatprep.subr.bf16.mxu0 0
      %1447 = vmatpush1.bf16.msra.mxu0 %v1423
      %1448 = vmatprep.subr.bf16.mxu0 0
      %1449 = vmatpush1.bf16.msra.mxu0 0
      %1450 = vmatprep.subr.bf16.mxu0 0
      %1451 = vmatpush1.bf16.msra.mxu0 0
      %1452 = vmatprep.subr.bf16.mxu0 0
      %1453 = vmatpush1.bf16.msra.mxu0 0
      %1454 = vmatprep.subr.bf16.mxu0 0
      %1455 = vmatpush1.bf16.msra.mxu0 0
      %1456 = vmatprep.subr.bf16.mxu0 0
      %1457 = vmatpush1.bf16.msra.mxu0 0
      %1458 = vmatprep.subr.bf16.mxu0 0
      %1459 = vmatpush1.bf16.msra.mxu0 0
      %1460 = vmatprep.subr.bf16.mxu0 0
      %1461 = vmatpush1.bf16.msra.mxu0 0
      %1462 = vmatprep.subr.bf16.mxu0 0
      %1463 = vmatpush1.bf16.msra.mxu0 0
      %1464 = vmatprep.mubr.bf16.mxu0 0
      %1465 = vmatmul.mubr.bf16.gmra.mrb[0].mxu0 %v1376
      %v1466 = vpop.f32.mrb[0].mxu0
      %v1467 = vadd.f32 0.0, %v1466
      %v1468 = vpop.f32.mrb[0].mxu0
      %v1469 = vpop.f32.mrb[0].mxu0
      %v1470 = vadd.f32 0.0, %v1469
      %v1471 = vpop.f32.mrb[0].mxu0
      %1472 = vmatprep.mubr.bf16.mxu0 0
      %1473 = vmatmul.mubr.bf16.gmra.mrb[0].mxu0 %v1377
      %v1474 = vpop.f32.mrb[0].mxu0
      %v1475 = vadd.f32 0.0, %v1474
      %v1476 = vpop.f32.mrb[0].mxu0
      %v1477 = vpop.f32.mrb[0].mxu0
      %v1478 = vadd.f32 0.0, %v1477
      %v1479 = vpop.f32.mrb[0].mxu0
      %1480 = vmatprep.mubr.bf16.mxu0 0
      %1481 = vmatmul.mubr.bf16.gmra.mrb[0].mxu0 %v1378
      %v1482 = vpop.f32.mrb[0].mxu0
      %v1483 = vadd.f32 0.0, %v1482
      %v1484 = vpop.f32.mrb[0].mxu0
      %v1485 = vpop.f32.mrb[0].mxu0
      %v1486 = vadd.f32 0.0, %v1485
      %v1487 = vpop.f32.mrb[0].mxu0
      %1488 = vmatprep.mubr.bf16.mxu0 0
      %1489 = vmatmul.mubr.bf16.gmra.mrb[0].mxu0 %v1379
      %v1490 = vpop.f32.mrb[0].mxu0
      %v1491 = vadd.f32 0.0, %v1490
      %v1492 = vpop.f32.mrb[0].mxu0
      %v1493 = vpop.f32.mrb[0].mxu0
      %v1494 = vadd.f32 0.0, %v1493
      %v1495 = vpop.f32.mrb[0].mxu0
      %1496 = vdwg.mxu0
      %v1497 = vadd.f32 %v1305, %v1467
      %v1498 = vadd.f32 %v1308, %v1470
      %v1499 = vadd.f32 %v1313, %v1475
      %v1500 = vadd.f32 %v1316, %v1478
      %v1501 = vadd.f32 %v1321, %v1483
      %v1502 = vadd.f32 %v1324, %v1486
      %v1503 = vadd.f32 %v1329, %v1491
      %v1504 = vadd.f32 %v1332, %v1494
      %v1505 = vadd.f32 %v1497, %v881
      %v1506 = vadd.f32 %v1498, %v881
      %v1507 = vadd.f32 %v1499, %v881
      %v1508 = vadd.f32 %v1500, %v881
      %v1509 = vadd.f32 %v1501, %v881
      %v1510 = vadd.f32 %v1502, %v881
      %v1511 = vadd.f32 %v1503, %v881
      %v1512 = vadd.f32 %v1504, %v881
      %v1513 = vmax.f32 %v1505, 0.0
      %v1514 = vmax.f32 %v1506, 0.0
      %v1515 = vmax.f32 %v1507, 0.0
      %v1516 = vmax.f32 %v1508, 0.0
      %v1517 = vmax.f32 %v1509, 0.0
      %v1518 = vmax.f32 %v1510, 0.0
      %v1519 = vmax.f32 %v1511, 0.0
      %v1520 = vmax.f32 %v1512, 0.0
      %v1521 = vmul.f32 %v1513, %v180
      %v1522 = vmul.f32 %v1514, %v181
      %v1523 = vmul.f32 %v1515, %v180
      %v1524 = vmul.f32 %v1516, %v181
      %v1525 = vmul.f32 %v1517, %v180
      %v1526 = vmul.f32 %v1518, %v181
      %v1527 = vmul.f32 %v1519, %v180
      %v1528 = vmul.f32 %v1520, %v181
      %v1529 = vpack.c.bf16 %v1522, %v1521
      %v1530 = vpack.c.bf16 %v1524, %v1523
      %v1531 = vpack.c.bf16 %v1526, %v1525
      %v1532 = vpack.c.bf16 %v1528, %v1527
      %v1537 = vunpack.c.l.b16 %v1529
      %v1538 = vunpack.c.h.b16 %v1529
      %v1539 = vunpack.c.l.b16 %v1530
      %v1540 = vunpack.c.h.b16 %v1530
      %v1541 = vunpack.c.l.b16 %v1531
      %v1542 = vunpack.c.h.b16 %v1531
      %v1543 = vunpack.c.l.b16 %v1532
      %v1544 = vunpack.c.h.b16 %v1532
      %v1545 = vpack.c.b16 %v1537, %v1537
      %v1546 = vpack.c.b16 %v1538, %v1538
      %v1547 = vpack.c.b16 %v1539, %v1539
      %v1548 = vpack.c.b16 %v1540, %v1540
      %v1549 = vpack.c.b16 %v1541, %v1541
      %v1550 = vpack.c.b16 %v1542, %v1542
      %v1551 = vpack.c.b16 %v1543, %v1543
      %v1552 = vpack.c.b16 %v1544, %v1544
      %s1561 = scalar_lea.vmem %s170, 64
      %1562 = vst [vmem:[%s1561] sm:$0xf] %v1545
      %1563 = vst [vmem:[%s1561 + $0x4] sm:$0xf] %v1546
      %1564 = vst [vmem:[%s1561 + $0x8] sm:$0xf] %v1547
      %1565 = vst [vmem:[%s1561 + $0xc] sm:$0xf] %v1548
      %1566 = vst [vmem:[%s1561 + $0x10] sm:$0xf] %v1549
      %1567 = vst [vmem:[%s1561 + $0x14] sm:$0xf] %v1550
      %1568 = vst [vmem:[%s1561 + $0x18] sm:$0xf] %v1551
      %1569 = vst [vmem:[%s1561 + $0x1c] sm:$0xf] %v1552
      %p1570 = scmp.lt.s32.totalorder %s14, 1
      %s1571 = scalar_select %p1570, %s14, 1
      %s1572 = smul.addr %s1571, 24
      %s1573 = smul.addr %s1572, 4
      %s1574 = scalar_lea.vmem %s3, %s1573
      // Predicated region
      $region33: #{conv2d_model_forward.3} parent=31 // pred_check
        %p1575 = pneg %p100
      $region34: #{conv2d_model_forward.3} parent=31 // pred_check_branch
        %1577 = sbr.rel (%p1575) target = $region36
      $region35: #{conv2d_model_forward.3} parent=31 // pred_region
        _
      $region36: #{conv2d_model_forward.3} parent=31 // pred_fallthru
        _
    $region32: #{conv2d_model_forward.3} parent=5 // pred_fallthru
      _
    %p1578 = scmp.le.s32.totalorder 2, %s9
    // Predicated region
    $region37: #{conv2d_model_forward.3} parent=5 // pred_check
      %p1579 = pneg %p1578
    $region38: #{conv2d_model_forward.3} parent=5 // pred_check_branch
      %1581 = sbr.rel (%p1579) target = $region40
    $region39: #{conv2d_model_forward.3} parent=5 // pred_region
      %s1582 = ssub.s32 %s9, 2
      // Predicated region
      $region41: #{conv2d_model_forward.3} parent=39 // pred_check
        %p1583 = pneg %p106
      $region42: #{conv2d_model_forward.3} parent=39 // pred_check_branch
        %1585 = sbr.rel (%p1583) target = $region44
      $region43: #{conv2d_model_forward.3} parent=39 // pred_region
        %p1586 = scmp.lt.s32.totalorder %s15, 1
        %s1587 = scalar_select %p1586, %s15, 1
        %s1588 = smul.addr %s1587, 24
        %s1589 = smul.addr %s1588, 4
        %s1590 = scalar_lea.vmem %s3, %s1589
      $region44: #{conv2d_model_forward.3} parent=39 // pred_fallthru
        _
    $region40: #{conv2d_model_forward.3} parent=5 // pred_fallthru
      _
  $region6: #{conv2d_model_forward.3} parent=0 // loop_footer
    %s13 = sadd.s32 1, %s9
  $region7: #{conv2d_model_forward.3} parent=0 // loop_footer_branch
    %8 = sbr.rel target = $region3
  $region8: #{conv2d_model_forward.3} parent=0 // loop_exit
    _

</llo_original>
